<compile_context>
chip_gen: v6e
topology: v6e:2x2x1
jax: 0.10.0
libtpu: 0.0.40
codegen_flags: <defaults>
</compile_context>

<pallas_src>
import functools

import jax
import jax.numpy as jnp
from jax.experimental import pallas as pl
from jax.experimental.pallas import tpu as pltpu


# --------------------------------------------------------------------------
# Kernels
# --------------------------------------------------------------------------
def _conv_stats_body(xin, m_ref, xpad_ref, act_ref, stats_ref, C):
    """Shared body: 3x3 conv (padding=1) of one sample + partial BN stats.

    xin      : (H, W*C)   lane-dense input (pre-activation already applied)
    m_ref    : (3, (W+2)*C, W*C) banded weight matrices, one per dy
    xpad_ref : ((H+2), (W+2)*C)  VMEM scratch (padded input)
    act_ref  : (1, H, W*C)       conv output (pre-BN)
    stats_ref: (1, 2, W*C)       [sum over H; sum of squares over H]
    """
    H, WC = xin.shape
    WPC = xpad_ref.shape[1]

    # Fill padded scratch: zero only the 1-wide halo ring, then the interior.
    zero_row = jnp.zeros((1, WPC), jnp.float32)
    zero_col = jnp.zeros((H, C), jnp.float32)
    xpad_ref[0:1, :] = zero_row
    xpad_ref[H + 1:H + 2, :] = zero_row
    xpad_ref[1:H + 1, 0:C] = zero_col
    xpad_ref[1:H + 1, WPC - C:WPC] = zero_col
    xpad_ref[1:H + 1, C:C + WC] = xin

    # conv3x3 == sum over dy of  xpad[dy:dy+H, :] @ M[dy]
    # (banded matmul: contiguous row-slice operands, no tap copies, K=144,
    #  N=128 -> full output-lane utilization on the MXU)
    acc = jnp.zeros((H, m_ref.shape[2]), jnp.float32)
    for dy in range(3):  # static unroll
        acc = acc + jnp.dot(xpad_ref[dy:dy + H, :], m_ref[dy],
                            preferred_element_type=jnp.float32)

    act_ref[0] = acc
    # Partial BN statistics (reduced over H here; over W and N in the wrapper).
    stats_ref[0, 0:1, :] = jnp.sum(acc, axis=0, keepdims=True)
    stats_ref[0, 1:2, :] = jnp.sum(acc * acc, axis=0, keepdims=True)


def _conv_kernel(x_ref, m_ref, act_ref, stats_ref, xpad_ref, *, C):
    """conv1 (+ partial BN1 stats). Conv bias dropped: cancelled by BN."""
    _conv_stats_body(x_ref[0], m_ref, xpad_ref, act_ref, stats_ref, C)


def _bn_relu_conv_kernel(a_ref, scale_ref, shift_ref, m_ref,
                         act_ref, stats_ref, xpad_ref, *, C):
    """bn1 (folded scale/shift) + relu1 + conv2 (+ partial BN2 stats)."""
    h = jnp.maximum(a_ref[0] * scale_ref[...] + shift_ref[...], 0.0)
    _conv_stats_body(h, m_ref, xpad_ref, act_ref, stats_ref, C)


def _bn_add_relu_kernel(x_ref, act_ref, scale_ref, shift_ref, o_ref):
    """bn2 (folded scale/shift) + residual add + relu2 — all lane-dense."""
    h = act_ref[0] * scale_ref[...] + shift_ref[...]
    o_ref[0] = jnp.maximum(x_ref[0] + h, 0.0)


# --------------------------------------------------------------------------
# Host-side helpers
# --------------------------------------------------------------------------
def _banded_weights(w_hwio, W):
    """(3,3,Cin,Cout) -> (3, (W+2)*Cin, W*Cout) block-banded matrices.

    M[dy][wi*Cin+ci, wo*Cout+co] = w[dy, wi-wo, ci, co]  if 0 <= wi-wo <= 2.
    Built once per layer (would be precomputed/cached in a real model).
    """
    kh, kw, Cin, Cout = w_hwio.shape
    wi = jnp.arange(W + 2)[None, :, None]
    wo = jnp.arange(W)[None, None, :]
    dx = jnp.arange(kw)[:, None, None]
    sel = (wi == wo + dx).astype(w_hwio.dtype)            # (3, W+2, W)
    m = jnp.einsum('xiw,yxco->yicwo', sel, w_hwio)        # (3, W+2, Cin, W, Cout)
    return m.reshape(kh, (W + 2) * Cin, W * Cout)


def _fold_bn(stats, gamma, beta, W, C, count, eps=1e-5):
    """Fold training-mode BN into per-channel scale/shift, tiled lane-dense.

    stats: (N, 2, W*C) per-sample [sum; sum_sq] partials from the conv kernel.
    Returns scale/shift of shape (1, W*C) (channel pattern repeated W times).
    """
    s = stats.reshape(-1, 2, W, C).sum(axis=(0, 2))       # (2, C) global sums
    mean = s[0] / count
    var = s[1] / count - mean * mean
    scale = gamma * jax.lax.rsqrt(var + eps)              # (C,)
    shift = beta - mean * scale
    return (jnp.tile(scale, W)[None, :].astype(jnp.float32),
            jnp.tile(shift, W)[None, :].astype(jnp.float32))


def block_forward(x_nchw, params):
    """Forward pass of Block. x_nchw: [N, C, H, W] float32 (PyTorch layout)."""
    w1, b1, g1, be1, w2, b2, g2, be2 = params
    del b1, b2  # conv biases are exactly cancelled by BN mean subtraction
    N, C, H, W = x_nchw.shape
    assert w1.shape == (3, 3, C, C), "residual x + h requires Cin == Cout"
    WC, WPC = W * C, (W + 2) * C
    count = N * H * W

    # NCHW -> NHWC -> lane-dense (N, H, W*C).  Collapsing (W, C) into the lane
    # axis is a free reshape; only the transpose moves data.
    # TODO(synk): in a chained ResNet keep activations NHWC/lane-dense
    # end-to-end and drop the boundary transposes entirely.
    x = jnp.transpose(x_nchw, (0, 2, 3, 1)).astype(jnp.float32).reshape(N, H, WC)

    m1 = _banded_weights(w1.astype(jnp.float32), W)
    m2 = _banded_weights(w2.astype(jnp.float32), W)

    act_sd = jax.ShapeDtypeStruct((N, H, WC), jnp.float32)
    stats_sd = jax.ShapeDtypeStruct((N, 2, WC), jnp.float32)
    act_spec = pl.BlockSpec((1, H, WC), lambda n: (n, 0, 0))
    stats_spec = pl.BlockSpec((1, 2, WC), lambda n: (n, 0, 0))
    w_spec = pl.BlockSpec((3, WPC, WC), lambda n: (0, 0, 0))   # resident weights
    vec_spec = pl.BlockSpec((1, WC), lambda n: (0, 0))
    cparams = pltpu.CompilerParams(
        dimension_semantics=("parallel",),          # 2 TCs on v7x; harmless on v5e/v6e
        vmem_limit_bytes=32 * 1024 * 1024)          # safe on v7x's 64 MiB VMEM
    scratch = [pltpu.VMEM((H + 2, WPC), jnp.float32)]
    # TODO(synk): for large spatial sizes (e.g. 224x224 ResNet) add a second
    # grid axis over H with a 1-row halo; batch-only tiling is enough here.

    # --- conv1 + per-sample partial BN1 stats ---------------------------------
    act1, stats1 = pl.pallas_call(
        functools.partial(_conv_kernel, C=C),
        grid=(N,),
        in_specs=[act_spec, w_spec],
        out_specs=(act_spec, stats_spec),
        out_shape=(act_sd, stats_sd),
        scratch_shapes=scratch,
        compiler_params=cparams,
    )(x, m1)
    scale1, shift1 = _fold_bn(stats1, g1, be1, W, C, count)

    # --- bn1 + relu1 + conv2 + per-sample partial BN2 stats -------------------
    act2, stats2 = pl.pallas_call(
        functools.partial(_bn_relu_conv_kernel, C=C),
        grid=(N,),
        in_specs=[act_spec, vec_spec, vec_spec, w_spec],
        out_specs=(act_spec, stats_spec),
        out_shape=(act_sd, stats_sd),
        scratch_shapes=scratch,
        compiler_params=cparams,
    )(act1, scale1, shift1, m2)
    scale2, shift2 = _fold_bn(stats2, g2, be2, W, C, count)

    # --- bn2 + residual add + relu2 -------------------------------------------
    y = pl.pallas_call(
        _bn_add_relu_kernel,
        grid=(N,),
        in_specs=[act_spec, act_spec, vec_spec, vec_spec],
        out_specs=act_spec,
        out_shape=act_sd,
        compiler_params=cparams,
    )(x, act2, scale2, shift2)

    # back to PyTorch's NCHW convention
    return jnp.transpose(y.reshape(N, H, W, C), (0, 3, 1, 2))


# --------------------------------------------------------------------------
# Pure-JAX reference (PyTorch training-mode forward semantics)
# --------------------------------------------------------------------------
def _ref_block(x_nchw, params):
    w1, b1, g1, be1, w2, b2, g2, be2 = params

    def conv(x, w, b):
        y = jax.lax.conv_general_dilated(
            x, w, window_strides=(1, 1), padding="SAME",
            dimension_numbers=("NCHW", "HWIO", "NCHW"),
            precision=jax.lax.Precision.HIGHEST)
        return y + b.reshape(1, -1, 1, 1)

    def bn(x, g, be):
        mu = jnp.mean(x, axis=(0, 2, 3), keepdims=True)
        var = jnp.mean((x - mu) ** 2, axis=(0, 2, 3), keepdims=True)
        return ((x - mu) * jax.lax.rsqrt(var + 1e-5)
                * g.reshape(1, -1, 1, 1) + be.reshape(1, -1, 1, 1))

    h = jax.nn.relu(bn(conv(x_nchw, w1, b1), g1, be1))
    h = bn(conv(h, w2, b2), g2, be2)
    return jax.nn.relu(x_nchw + h)


if __name__ == "__main__":
    key = jax.random.PRNGKey(0)
    N, C, H, W = 2, 8, 16, 16          # channel_in == channel_out (residual block)

    k_x, k_w1, k_b1, k_w2, k_b2 = jax.random.split(key, 5)
    x = jax.random.normal(k_x, (N, C, H, W), jnp.float32)

    # Synthetic parameters (shapes match nn.Conv2d / nn.BatchNorm2d).
    w1 = jax.random.normal(k_w1, (3, 3, C, C), jnp.float32) * 0.1   # conv1 (HWIO)
    b1 = jax.random.normal(k_b1, (C,), jnp.float32) * 0.1
    w2 = jax.random.normal(k_w2, (3, 3, C, C), jnp.float32) * 0.1   # conv2 (HWIO)
    b2 = jax.random.normal(k_b2, (C,), jnp.float32) * 0.1
    g1 = jnp.ones((C,), jnp.float32)    # bn1 weight
    be1 = jnp.zeros((C,), jnp.float32)  # bn1 bias
    g2 = jnp.ones((C,), jnp.float32)    # bn2 weight
    be2 = jnp.zeros((C,), jnp.float32)  # bn2 bias
    params = (w1, b1, g1, be1, w2, b2, g2, be2)

    y = jax.jit(block_forward)(x, params)
    jax.block_until_ready(y)

    y_ref = _ref_block(x, params)
    err = float(jnp.max(jnp.abs(y - y_ref)))
    assert jnp.allclose(y, y_ref, atol=1e-3, rtol=1e-3), f"max abs err = {err}"

    print("KERNEL_OK")
</pallas_src>

<mosaic_0001>
module attributes {stable_mosaic.version = 11 : i64} {
  func.func @_conv_kernel(%arg0: i32, %arg1: memref<1x16x128xf32, #tpu.memory_space<vmem>>, %arg2: memref<3x144x128xf32, #tpu.memory_space<vmem>>, %arg3: memref<1x16x128xf32, #tpu.memory_space<vmem>>, %arg4: memref<1x2x128xf32, #tpu.memory_space<vmem>>, %arg5: memref<18x144xf32, #tpu.memory_space<vmem>>) attributes {dimension_semantics = [#tpu.dimension_semantics<parallel>], iteration_bounds = array<i64: 2>, scalar_prefetch = 0 : i64, scratch_operands = 1 : i64, tpu.core_type = #tpu.core_type<tc>, window_params = [{transform_indices = @transform_0, window_bounds = array<i64: 1, 16, 128>}, {pipeline_mode = #tpu.pipeline_mode<synchronous>, transform_indices = @transform_1, window_bounds = array<i64: 3, 144, 128>}, {transform_indices = @transform_2, window_bounds = array<i64: 1, 16, 128>}, {transform_indices = @transform_3, window_bounds = array<i64: 1, 2, 128>}]} {
    %c0 = arith.constant 0 : index
    %c0_0 = arith.constant 0 : index
    %c0_1 = arith.constant 0 : index
    %0 = vector.load %arg1[%c0, %c0_0, %c0_1] : memref<1x16x128xf32, #tpu.memory_space<vmem>>, vector<1x16x128xf32>
    %1 = vector.shape_cast %0 : vector<1x16x128xf32> to vector<16x128xf32>
    %cst = arith.constant 0.000000e+00 : f32
    %2 = vector.broadcast %cst : f32 to vector<1x144xf32>
    %cst_2 = arith.constant 0.000000e+00 : f32
    %3 = vector.broadcast %cst_2 : f32 to vector<16x8xf32>
    %c0_3 = arith.constant 0 : index
    %c0_4 = arith.constant 0 : index
    %4 = vector.load %arg5[%c0_3, %c0_4] : memref<18x144xf32, #tpu.memory_space<vmem>>, vector<1x144xf32>
    tpu.vector_store %arg5[%c0_3, %c0_4], %2 {strides = array<i32>} : memref<18x144xf32, #tpu.memory_space<vmem>>, vector<1x144xf32>,
    %c17 = arith.constant 17 : index
    %c0_5 = arith.constant 0 : index
    %5 = vector.load %arg5[%c17, %c0_5] : memref<18x144xf32, #tpu.memory_space<vmem>>, vector<1x144xf32>
    tpu.vector_store %arg5[%c17, %c0_5], %2 {strides = array<i32>} : memref<18x144xf32, #tpu.memory_space<vmem>>, vector<1x144xf32>,
    %c1 = arith.constant 1 : index
    %c0_6 = arith.constant 0 : index
    %6 = vector.load %arg5[%c1, %c0_6] : memref<18x144xf32, #tpu.memory_space<vmem>>, vector<16x8xf32>
    tpu.vector_store %arg5[%c1, %c0_6], %3 {strides = array<i32>} : memref<18x144xf32, #tpu.memory_space<vmem>>, vector<16x8xf32>,
    %c1_7 = arith.constant 1 : index
    %c136 = arith.constant 136 : index
    %7 = vector.load %arg5[%c1_7, %c136] : memref<18x144xf32, #tpu.memory_space<vmem>>, vector<16x8xf32>
    tpu.vector_store %arg5[%c1_7, %c136], %3 {strides = array<i32>} : memref<18x144xf32, #tpu.memory_space<vmem>>, vector<16x8xf32>,
    %c1_8 = arith.constant 1 : index
    %c8 = arith.constant 8 : index
    %8 = vector.load %arg5[%c1_8, %c8] : memref<18x144xf32, #tpu.memory_space<vmem>>, vector<16x128xf32>
    tpu.vector_store %arg5[%c1_8, %c8], %1 {strides = array<i32>} : memref<18x144xf32, #tpu.memory_space<vmem>>, vector<16x128xf32>,
    %cst_9 = arith.constant 0.000000e+00 : f32
    %9 = vector.broadcast %cst_9 : f32 to vector<16x128xf32>
    %c0_10 = arith.constant 0 : index
    %c0_11 = arith.constant 0 : index
    %10 = vector.load %arg5[%c0_10, %c0_11] : memref<18x144xf32, #tpu.memory_space<vmem>>, vector<16x144xf32>
    %c0_12 = arith.constant 0 : index
    %c0_13 = arith.constant 0 : index
    %c0_14 = arith.constant 0 : index
    %11 = vector.load %arg2[%c0_12, %c0_13, %c0_14] : memref<3x144x128xf32, #tpu.memory_space<vmem>>, vector<1x144x128xf32>
    %12 = vector.shape_cast %11 : vector<1x144x128xf32> to vector<144x128xf32>
    %cst_15 = arith.constant dense<0.000000e+00> : vector<16x128xf32>
    %13 = tpu.matmul %10, %12, %cst_15 {dimension_numbers = #tpu.dot_dimension_numbers<[1], [0], [0], [1], [0, 0, 1, 1], [], []>} : vector<16x144xf32>, vector<144x128xf32>, vector<16x128xf32> -> vector<16x128xf32>
    %14 = arith.addf %9, %13 : vector<16x128xf32>
    %c1_16 = arith.constant 1 : index
    %c0_17 = arith.constant 0 : index
    %15 = vector.load %arg5[%c1_16, %c0_17] : memref<18x144xf32, #tpu.memory_space<vmem>>, vector<16x144xf32>
    %c1_18 = arith.constant 1 : index
    %c0_19 = arith.constant 0 : index
    %c0_20 = arith.constant 0 : index
    %16 = vector.load %arg2[%c1_18, %c0_19, %c0_20] : memref<3x144x128xf32, #tpu.memory_space<vmem>>, vector<1x144x128xf32>
    %17 = vector.shape_cast %16 : vector<1x144x128xf32> to vector<144x128xf32>
    %cst_21 = arith.constant dense<0.000000e+00> : vector<16x128xf32>
    %18 = tpu.matmul %15, %17, %cst_21 {dimension_numbers = #tpu.dot_dimension_numbers<[1], [0], [0], [1], [0, 0, 1, 1], [], []>} : vector<16x144xf32>, vector<144x128xf32>, vector<16x128xf32> -> vector<16x128xf32>
    %19 = arith.addf %14, %18 : vector<16x128xf32>
    %c2 = arith.constant 2 : index
    %c0_22 = arith.constant 0 : index
    %20 = vector.load %arg5[%c2, %c0_22] : memref<18x144xf32, #tpu.memory_space<vmem>>, vector<16x144xf32>
    %c2_23 = arith.constant 2 : index
    %c0_24 = arith.constant 0 : index
    %c0_25 = arith.constant 0 : index
    %21 = vector.load %arg2[%c2_23, %c0_24, %c0_25] : memref<3x144x128xf32, #tpu.memory_space<vmem>>, vector<1x144x128xf32>
    %22 = vector.shape_cast %21 : vector<1x144x128xf32> to vector<144x128xf32>
    %cst_26 = arith.constant dense<0.000000e+00> : vector<16x128xf32>
    %23 = tpu.matmul %20, %22, %cst_26 {dimension_numbers = #tpu.dot_dimension_numbers<[1], [0], [0], [1], [0, 0, 1, 1], [], []>} : vector<16x144xf32>, vector<144x128xf32>, vector<16x128xf32> -> vector<16x128xf32>
    %24 = arith.addf %19, %23 : vector<16x128xf32>
    %c0_27 = arith.constant 0 : index
    %c0_28 = arith.constant 0 : index
    %c0_29 = arith.constant 0 : index
    %25 = vector.load %arg3[%c0_27, %c0_28, %c0_29] : memref<1x16x128xf32, #tpu.memory_space<vmem>>, vector<1x16x128xf32>
    %26 = vector.shape_cast %25 : vector<1x16x128xf32> to vector<16x128xf32>
    %27 = vector.shape_cast %24 : vector<16x128xf32> to vector<1x16x128xf32>
    tpu.vector_store %arg3[%c0_27, %c0_28, %c0_29], %27 {strides = array<i32>} : memref<1x16x128xf32, #tpu.memory_space<vmem>>, vector<1x16x128xf32>,
    %cst_30 = arith.constant dense<0.000000e+00> : vector<128xf32>
    %28 = vector.multi_reduction <add>, %24, %cst_30 [0] : vector<16x128xf32> to vector<128xf32>
    %29 = vector.shape_cast %28 : vector<128xf32> to vector<1x128xf32>
    %c0_31 = arith.constant 0 : index
    %c0_32 = arith.constant 0 : index
    %c0_33 = arith.constant 0 : index
    %30 = vector.load %arg4[%c0_31, %c0_32, %c0_33] : memref<1x2x128xf32, #tpu.memory_space<vmem>>, vector<1x1x128xf32>
    %31 = vector.shape_cast %30 : vector<1x1x128xf32> to vector<1x128xf32>
    %32 = vector.shape_cast %29 : vector<1x128xf32> to vector<1x1x128xf32>
    tpu.vector_store %arg4[%c0_31, %c0_32, %c0_33], %32 {strides = array<i32>} : memref<1x2x128xf32, #tpu.memory_space<vmem>>, vector<1x1x128xf32>,
    %33 = arith.mulf %24, %24 : vector<16x128xf32>
    %cst_34 = arith.constant dense<0.000000e+00> : vector<128xf32>
    %34 = vector.multi_reduction <add>, %33, %cst_34 [0] : vector<16x128xf32> to vector<128xf32>
    %35 = vector.shape_cast %34 : vector<128xf32> to vector<1x128xf32>
    %c0_35 = arith.constant 0 : index
    %c1_36 = arith.constant 1 : index
    %c0_37 = arith.constant 0 : index
    %36 = vector.load %arg4[%c0_35, %c1_36, %c0_37] : memref<1x2x128xf32, #tpu.memory_space<vmem>>, vector<1x1x128xf32>
    %37 = vector.shape_cast %36 : vector<1x1x128xf32> to vector<1x128xf32>
    %38 = vector.shape_cast %35 : vector<1x128xf32> to vector<1x1x128xf32>
    tpu.vector_store %arg4[%c0_35, %c1_36, %c0_37], %38 {strides = array<i32>} : memref<1x2x128xf32, #tpu.memory_space<vmem>>, vector<1x1x128xf32>,
    return
  }
  func.func @transform_0(%arg0: i32) -> (i32, i32, i32) {
    %c0_i32 = arith.constant 0 : i32
    %c0_i32_0 = arith.constant 0 : i32
    %c0_i32_1 = arith.constant 0 : i32
    return %arg0, %c0_i32, %c0_i32_0 : i32, i32, i32
  }
  func.func @transform_1(%arg0: i32) -> (i32, i32, i32) {
    %c0_i32 = arith.constant 0 : i32
    %c0_i32_0 = arith.constant 0 : i32
    %c0_i32_1 = arith.constant 0 : i32
    %c0_i32_2 = arith.constant 0 : i32
    return %c0_i32, %c0_i32_0, %c0_i32_1 : i32, i32, i32
  }
  func.func @transform_2(%arg0: i32) -> (i32, i32, i32) {
    %c0_i32 = arith.constant 0 : i32
    %c0_i32_0 = arith.constant 0 : i32
    %c0_i32_1 = arith.constant 0 : i32
    return %arg0, %c0_i32, %c0_i32_0 : i32, i32, i32
  }
  func.func @transform_3(%arg0: i32) -> (i32, i32, i32) {
    %c0_i32 = arith.constant 0 : i32
    %c0_i32_0 = arith.constant 0 : i32
    %c0_i32_1 = arith.constant 0 : i32
    return %arg0, %c0_i32, %c0_i32_0 : i32, i32, i32
  }
}

module attributes {stable_mosaic.version = 11 : i64} {
  func.func @_bn_relu_conv_kernel(%arg0: i32, %arg1: memref<1x16x128xf32, #tpu.memory_space<vmem>>, %arg2: memref<1x128xf32, #tpu.memory_space<vmem>>, %arg3: memref<1x128xf32, #tpu.memory_space<vmem>>, %arg4: memref<3x144x128xf32, #tpu.memory_space<vmem>>, %arg5: memref<1x16x128xf32, #tpu.memory_space<vmem>>, %arg6: memref<1x2x128xf32, #tpu.memory_space<vmem>>, %arg7: memref<18x144xf32, #tpu.memory_space<vmem>>) attributes {dimension_semantics = [#tpu.dimension_semantics<parallel>], iteration_bounds = array<i64: 2>, scalar_prefetch = 0 : i64, scratch_operands = 1 : i64, tpu.core_type = #tpu.core_type<tc>, window_params = [{transform_indices = @transform_0, window_bounds = array<i64: 1, 16, 128>}, {pipeline_mode = #tpu.pipeline_mode<synchronous>, transform_indices = @transform_1, window_bounds = array<i64: 1, 128>}, {pipeline_mode = #tpu.pipeline_mode<synchronous>, transform_indices = @transform_2, window_bounds = array<i64: 1, 128>}, {pipeline_mode = #tpu.pipeline_mode<synchronous>, transform_indices = @transform_3, window_bounds = array<i64: 3, 144, 128>}, {transform_indices = @transform_4, window_bounds = array<i64: 1, 16, 128>}, {transform_indices = @transform_5, window_bounds = array<i64: 1, 2, 128>}]} {
    %c0 = arith.constant 0 : index
    %c0_0 = arith.constant 0 : index
    %c0_1 = arith.constant 0 : index
    %0 = vector.load %arg1[%c0, %c0_0, %c0_1] : memref<1x16x128xf32, #tpu.memory_space<vmem>>, vector<1x16x128xf32>
    %1 = vector.shape_cast %0 : vector<1x16x128xf32> to vector<16x128xf32>
    %c0_2 = arith.constant 0 : index
    %c0_3 = arith.constant 0 : index
    %2 = vector.load %arg2[%c0_2, %c0_3] : memref<1x128xf32, #tpu.memory_space<vmem>>, vector<1x128xf32>
    %3 = vector.broadcast %2 : vector<1x128xf32> to vector<16x128xf32>
    %4 = arith.mulf %1, %3 : vector<16x128xf32>
    %c0_4 = arith.constant 0 : index
    %c0_5 = arith.constant 0 : index
    %5 = vector.load %arg3[%c0_4, %c0_5] : memref<1x128xf32, #tpu.memory_space<vmem>>, vector<1x128xf32>
    %6 = vector.broadcast %5 : vector<1x128xf32> to vector<16x128xf32>
    %7 = arith.addf %4, %6 : vector<16x128xf32>
    %cst = arith.constant 0.000000e+00 : f32
    %8 = vector.broadcast %cst : f32 to vector<16x128xf32>
    %9 = arith.maximumf %7, %8 : vector<16x128xf32>
    %cst_6 = arith.constant 0.000000e+00 : f32
    %10 = vector.broadcast %cst_6 : f32 to vector<1x144xf32>
    %cst_7 = arith.constant 0.000000e+00 : f32
    %11 = vector.broadcast %cst_7 : f32 to vector<16x8xf32>
    %c0_8 = arith.constant 0 : index
    %c0_9 = arith.constant 0 : index
    %12 = vector.load %arg7[%c0_8, %c0_9] : memref<18x144xf32, #tpu.memory_space<vmem>>, vector<1x144xf32>
    tpu.vector_store %arg7[%c0_8, %c0_9], %10 {strides = array<i32>} : memref<18x144xf32, #tpu.memory_space<vmem>>, vector<1x144xf32>,
    %c17 = arith.constant 17 : index
    %c0_10 = arith.constant 0 : index
    %13 = vector.load %arg7[%c17, %c0_10] : memref<18x144xf32, #tpu.memory_space<vmem>>, vector<1x144xf32>
    tpu.vector_store %arg7[%c17, %c0_10], %10 {strides = array<i32>} : memref<18x144xf32, #tpu.memory_space<vmem>>, vector<1x144xf32>,
    %c1 = arith.constant 1 : index
    %c0_11 = arith.constant 0 : index
    %14 = vector.load %arg7[%c1, %c0_11] : memref<18x144xf32, #tpu.memory_space<vmem>>, vector<16x8xf32>
    tpu.vector_store %arg7[%c1, %c0_11], %11 {strides = array<i32>} : memref<18x144xf32, #tpu.memory_space<vmem>>, vector<16x8xf32>,
    %c1_12 = arith.constant 1 : index
    %c136 = arith.constant 136 : index
    %15 = vector.load %arg7[%c1_12, %c136] : memref<18x144xf32, #tpu.memory_space<vmem>>, vector<16x8xf32>
    tpu.vector_store %arg7[%c1_12, %c136], %11 {strides = array<i32>} : memref<18x144xf32, #tpu.memory_space<vmem>>, vector<16x8xf32>,
    %c1_13 = arith.constant 1 : index
    %c8 = arith.constant 8 : index
    %16 = vector.load %arg7[%c1_13, %c8] : memref<18x144xf32, #tpu.memory_space<vmem>>, vector<16x128xf32>
    tpu.vector_store %arg7[%c1_13, %c8], %9 {strides = array<i32>} : memref<18x144xf32, #tpu.memory_space<vmem>>, vector<16x128xf32>,
    %cst_14 = arith.constant 0.000000e+00 : f32
    %17 = vector.broadcast %cst_14 : f32 to vector<16x128xf32>
    %c0_15 = arith.constant 0 : index
    %c0_16 = arith.constant 0 : index
    %18 = vector.load %arg7[%c0_15, %c0_16] : memref<18x144xf32, #tpu.memory_space<vmem>>, vector<16x144xf32>
    %c0_17 = arith.constant 0 : index
    %c0_18 = arith.constant 0 : index
    %c0_19 = arith.constant 0 : index
    %19 = vector.load %arg4[%c0_17, %c0_18, %c0_19] : memref<3x144x128xf32, #tpu.memory_space<vmem>>, vector<1x144x128xf32>
    %20 = vector.shape_cast %19 : vector<1x144x128xf32> to vector<144x128xf32>
    %cst_20 = arith.constant dense<0.000000e+00> : vector<16x128xf32>
    %21 = tpu.matmul %18, %20, %cst_20 {dimension_numbers = #tpu.dot_dimension_numbers<[1], [0], [0], [1], [0, 0, 1, 1], [], []>} : vector<16x144xf32>, vector<144x128xf32>, vector<16x128xf32> -> vector<16x128xf32>
    %22 = arith.addf %17, %21 : vector<16x128xf32>
    %c1_21 = arith.constant 1 : index
    %c0_22 = arith.constant 0 : index
    %23 = vector.load %arg7[%c1_21, %c0_22] : memref<18x144xf32, #tpu.memory_space<vmem>>, vector<16x144xf32>
    %c1_23 = arith.constant 1 : index
    %c0_24 = arith.constant 0 : index
    %c0_25 = arith.constant 0 : index
    %24 = vector.load %arg4[%c1_23, %c0_24, %c0_25] : memref<3x144x128xf32, #tpu.memory_space<vmem>>, vector<1x144x128xf32>
    %25 = vector.shape_cast %24 : vector<1x144x128xf32> to vector<144x128xf32>
    %cst_26 = arith.constant dense<0.000000e+00> : vector<16x128xf32>
    %26 = tpu.matmul %23, %25, %cst_26 {dimension_numbers = #tpu.dot_dimension_numbers<[1], [0], [0], [1], [0, 0, 1, 1], [], []>} : vector<16x144xf32>, vector<144x128xf32>, vector<16x128xf32> -> vector<16x128xf32>
    %27 = arith.addf %22, %26 : vector<16x128xf32>
    %c2 = arith.constant 2 : index
    %c0_27 = arith.constant 0 : index
    %28 = vector.load %arg7[%c2, %c0_27] : memref<18x144xf32, #tpu.memory_space<vmem>>, vector<16x144xf32>
    %c2_28 = arith.constant 2 : index
    %c0_29 = arith.constant 0 : index
    %c0_30 = arith.constant 0 : index
    %29 = vector.load %arg4[%c2_28, %c0_29, %c0_30] : memref<3x144x128xf32, #tpu.memory_space<vmem>>, vector<1x144x128xf32>
    %30 = vector.shape_cast %29 : vector<1x144x128xf32> to vector<144x128xf32>
    %cst_31 = arith.constant dense<0.000000e+00> : vector<16x128xf32>
    %31 = tpu.matmul %28, %30, %cst_31 {dimension_numbers = #tpu.dot_dimension_numbers<[1], [0], [0], [1], [0, 0, 1, 1], [], []>} : vector<16x144xf32>, vector<144x128xf32>, vector<16x128xf32> -> vector<16x128xf32>
    %32 = arith.addf %27, %31 : vector<16x128xf32>
    %c0_32 = arith.constant 0 : index
    %c0_33 = arith.constant 0 : index
    %c0_34 = arith.constant 0 : index
    %33 = vector.load %arg5[%c0_32, %c0_33, %c0_34] : memref<1x16x128xf32, #tpu.memory_space<vmem>>, vector<1x16x128xf32>
    %34 = vector.shape_cast %33 : vector<1x16x128xf32> to vector<16x128xf32>
    %35 = vector.shape_cast %32 : vector<16x128xf32> to vector<1x16x128xf32>
    tpu.vector_store %arg5[%c0_32, %c0_33, %c0_34], %35 {strides = array<i32>} : memref<1x16x128xf32, #tpu.memory_space<vmem>>, vector<1x16x128xf32>,
    %cst_35 = arith.constant dense<0.000000e+00> : vector<128xf32>
    %36 = vector.multi_reduction <add>, %32, %cst_35 [0] : vector<16x128xf32> to vector<128xf32>
    %37 = vector.shape_cast %36 : vector<128xf32> to vector<1x128xf32>
    %c0_36 = arith.constant 0 : index
    %c0_37 = arith.constant 0 : index
    %c0_38 = arith.constant 0 : index
    %38 = vector.load %arg6[%c0_36, %c0_37, %c0_38] : memref<1x2x128xf32, #tpu.memory_space<vmem>>, vector<1x1x128xf32>
    %39 = vector.shape_cast %38 : vector<1x1x128xf32> to vector<1x128xf32>
    %40 = vector.shape_cast %37 : vector<1x128xf32> to vector<1x1x128xf32>
    tpu.vector_store %arg6[%c0_36, %c0_37, %c0_38], %40 {strides = array<i32>} : memref<1x2x128xf32, #tpu.memory_space<vmem>>, vector<1x1x128xf32>,
    %41 = arith.mulf %32, %32 : vector<16x128xf32>
    %cst_39 = arith.constant dense<0.000000e+00> : vector<128xf32>
    %42 = vector.multi_reduction <add>, %41, %cst_39 [0] : vector<16x128xf32> to vector<128xf32>
    %43 = vector.shape_cast %42 : vector<128xf32> to vector<1x128xf32>
    %c0_40 = arith.constant 0 : index
    %c1_41 = arith.constant 1 : index
    %c0_42 = arith.constant 0 : index
    %44 = vector.load %arg6[%c0_40, %c1_41, %c0_42] : memref<1x2x128xf32, #tpu.memory_space<vmem>>, vector<1x1x128xf32>
    %45 = vector.shape_cast %44 : vector<1x1x128xf32> to vector<1x128xf32>
    %46 = vector.shape_cast %43 : vector<1x128xf32> to vector<1x1x128xf32>
    tpu.vector_store %arg6[%c0_40, %c1_41, %c0_42], %46 {strides = array<i32>} : memref<1x2x128xf32, #tpu.memory_space<vmem>>, vector<1x1x128xf32>,
    return
  }
  func.func @transform_0(%arg0: i32) -> (i32, i32, i32) {
    %c0_i32 = arith.constant 0 : i32
    %c0_i32_0 = arith.constant 0 : i32
    %c0_i32_1 = arith.constant 0 : i32
    return %arg0, %c0_i32, %c0_i32_0 : i32, i32, i32
  }
  func.func @transform_1(%arg0: i32) -> (i32, i32) {
    %c0_i32 = arith.constant 0 : i32
    %c0_i32_0 = arith.constant 0 : i32
    %c0_i32_1 = arith.constant 0 : i32
    return %c0_i32, %c0_i32_0 : i32, i32
  }
  func.func @transform_2(%arg0: i32) -> (i32, i32) {
    %c0_i32 = arith.constant 0 : i32
    %c0_i32_0 = arith.constant 0 : i32
    %c0_i32_1 = arith.constant 0 : i32
    return %c0_i32, %c0_i32_0 : i32, i32
  }
  func.func @transform_3(%arg0: i32) -> (i32, i32, i32) {
    %c0_i32 = arith.constant 0 : i32
    %c0_i32_0 = arith.constant 0 : i32
    %c0_i32_1 = arith.constant 0 : i32
    %c0_i32_2 = arith.constant 0 : i32
    return %c0_i32, %c0_i32_0, %c0_i32_1 : i32, i32, i32
  }
  func.func @transform_4(%arg0: i32) -> (i32, i32, i32) {
    %c0_i32 = arith.constant 0 : i32
    %c0_i32_0 = arith.constant 0 : i32
    %c0_i32_1 = arith.constant 0 : i32
    return %arg0, %c0_i32, %c0_i32_0 : i32, i32, i32
  }
  func.func @transform_5(%arg0: i32) -> (i32, i32, i32) {
    %c0_i32 = arith.constant 0 : i32
    %c0_i32_0 = arith.constant 0 : i32
    %c0_i32_1 = arith.constant 0 : i32
    return %arg0, %c0_i32, %c0_i32_0 : i32, i32, i32
  }
}

module attributes {stable_mosaic.version = 11 : i64} {
  func.func @_bn_add_relu_kernel(%arg0: i32, %arg1: memref<1x16x128xf32, #tpu.memory_space<vmem>>, %arg2: memref<1x16x128xf32, #tpu.memory_space<vmem>>, %arg3: memref<1x128xf32, #tpu.memory_space<vmem>>, %arg4: memref<1x128xf32, #tpu.memory_space<vmem>>, %arg5: memref<1x16x128xf32, #tpu.memory_space<vmem>>) attributes {dimension_semantics = [#tpu.dimension_semantics<parallel>], iteration_bounds = array<i64: 2>, scalar_prefetch = 0 : i64, scratch_operands = 0 : i64, tpu.core_type = #tpu.core_type<tc>, window_params = [{transform_indices = @transform_0, window_bounds = array<i64: 1, 16, 128>}, {transform_indices = @transform_1, window_bounds = array<i64: 1, 16, 128>}, {pipeline_mode = #tpu.pipeline_mode<synchronous>, transform_indices = @transform_2, window_bounds = array<i64: 1, 128>}, {pipeline_mode = #tpu.pipeline_mode<synchronous>, transform_indices = @transform_3, window_bounds = array<i64: 1, 128>}, {transform_indices = @transform_4, window_bounds = array<i64: 1, 16, 128>}]} {
    %c0 = arith.constant 0 : index
    %c0_0 = arith.constant 0 : index
    %c0_1 = arith.constant 0 : index
    %0 = vector.load %arg2[%c0, %c0_0, %c0_1] : memref<1x16x128xf32, #tpu.memory_space<vmem>>, vector<1x16x128xf32>
    %1 = vector.shape_cast %0 : vector<1x16x128xf32> to vector<16x128xf32>
    %c0_2 = arith.constant 0 : index
    %c0_3 = arith.constant 0 : index
    %2 = vector.load %arg3[%c0_2, %c0_3] : memref<1x128xf32, #tpu.memory_space<vmem>>, vector<1x128xf32>
    %3 = vector.broadcast %2 : vector<1x128xf32> to vector<16x128xf32>
    %4 = arith.mulf %1, %3 : vector<16x128xf32>
    %c0_4 = arith.constant 0 : index
    %c0_5 = arith.constant 0 : index
    %5 = vector.load %arg4[%c0_4, %c0_5] : memref<1x128xf32, #tpu.memory_space<vmem>>, vector<1x128xf32>
    %6 = vector.broadcast %5 : vector<1x128xf32> to vector<16x128xf32>
    %7 = arith.addf %4, %6 : vector<16x128xf32>
    %c0_6 = arith.constant 0 : index
    %c0_7 = arith.constant 0 : index
    %c0_8 = arith.constant 0 : index
    %8 = vector.load %arg1[%c0_6, %c0_7, %c0_8] : memref<1x16x128xf32, #tpu.memory_space<vmem>>, vector<1x16x128xf32>
    %9 = vector.shape_cast %8 : vector<1x16x128xf32> to vector<16x128xf32>
    %10 = arith.addf %9, %7 : vector<16x128xf32>
    %cst = arith.constant 0.000000e+00 : f32
    %11 = vector.broadcast %cst : f32 to vector<16x128xf32>
    %12 = arith.maximumf %10, %11 : vector<16x128xf32>
    %c0_9 = arith.constant 0 : index
    %c0_10 = arith.constant 0 : index
    %c0_11 = arith.constant 0 : index
    %13 = vector.load %arg5[%c0_9, %c0_10, %c0_11] : memref<1x16x128xf32, #tpu.memory_space<vmem>>, vector<1x16x128xf32>
    %14 = vector.shape_cast %13 : vector<1x16x128xf32> to vector<16x128xf32>
    %15 = vector.shape_cast %12 : vector<16x128xf32> to vector<1x16x128xf32>
    tpu.vector_store %arg5[%c0_9, %c0_10, %c0_11], %15 {strides = array<i32>} : memref<1x16x128xf32, #tpu.memory_space<vmem>>, vector<1x16x128xf32>,
    return
  }
  func.func @transform_0(%arg0: i32) -> (i32, i32, i32) {
    %c0_i32 = arith.constant 0 : i32
    %c0_i32_0 = arith.constant 0 : i32
    %c0_i32_1 = arith.constant 0 : i32
    return %arg0, %c0_i32, %c0_i32_0 : i32, i32, i32
  }
  func.func @transform_1(%arg0: i32) -> (i32, i32, i32) {
    %c0_i32 = arith.constant 0 : i32
    %c0_i32_0 = arith.constant 0 : i32
    %c0_i32_1 = arith.constant 0 : i32
    return %arg0, %c0_i32, %c0_i32_0 : i32, i32, i32
  }
  func.func @transform_2(%arg0: i32) -> (i32, i32) {
    %c0_i32 = arith.constant 0 : i32
    %c0_i32_0 = arith.constant 0 : i32
    %c0_i32_1 = arith.constant 0 : i32
    return %c0_i32, %c0_i32_0 : i32, i32
  }
  func.func @transform_3(%arg0: i32) -> (i32, i32) {
    %c0_i32 = arith.constant 0 : i32
    %c0_i32_0 = arith.constant 0 : i32
    %c0_i32_1 = arith.constant 0 : i32
    return %c0_i32, %c0_i32_0 : i32, i32
  }
  func.func @transform_4(%arg0: i32) -> (i32, i32, i32) {
    %c0_i32 = arith.constant 0 : i32
    %c0_i32_0 = arith.constant 0 : i32
    %c0_i32_1 = arith.constant 0 : i32
    return %arg0, %c0_i32, %c0_i32_0 : i32, i32, i32
  }
}

</mosaic_0001>

<llo_original>
// kernel: tile.23
$region0: #{tile.23}
  #allocation0 [shape = 's32[1]{0}', space=sflag, size = 0x4, scoped, tag = 'scoped memory for tile.23']
  %s0 = inlined_call_operand.vmem [shape: f32[8], index: 0, kind: input, shape index: {}]
  %s1 = inlined_call_operand.vmem [shape: f32[16,8], index: 1, kind: output, shape index: {}]
  // Predicated region
  $region2: #{tile.23} parent=0 // pred_check
    _
  $region3: #{tile.23} parent=0 // pred_check_branch
    %3 = sbr.rel (0) target = $region5
  $region4: #{tile.23} parent=0 // pred_region
    _
  $region5: #{tile.23} parent=0 // pred_fallthru
    _
  %v4 = vld [vmem:[%s0] ss:$0 sm:$0xff]
  %5 = vst [vmem:[%s1] sm:$0xff] %v4
  %s6 = scalar_lea.vmem %s1, 8
  %7 = vst [vmem:[%s6] sm:$0xff] %v4

// kernel: tile.24
$region0: #{tile.24}
  %s0 = inlined_call_operand.vmem [shape: f32[16,8], index: 0, kind: input, shape index: {}]
  %s1 = inlined_call_operand.vmem [shape: f32[1,128], index: 1, kind: output, shape index: {}]
  $region1: #{tile.24} parent=0
    #allocation0 [shape = 'u8[4096]{0}', space=vmem, size = 0x1000, scoped, tag = 'scoped mem for output reshape']
    %v2 = vld [vmem:[%s0] sm:$0x1]
    %vm3 = vcmask 64512
    %4 = vst.msk [vmem:[#allocation0] sm:$0x1] %vm3, %v2
    %s5 = scalar_lea.vmem %s0, 15
    %v6 = vld [vmem:[%s5] sm:$0x1]
    %7 = vrot.lane.b32.xlu0 %v6, 120
    %v8 = vpop.permute.xlu0 %7
    %vm9 = vcmask 1048512
    %10 = vst.msk [vmem:[#allocation0] sm:$0x1] %vm9, %v8
    %s11 = scalar_lea.vmem %s0, 14
    %v12 = vld [vmem:[%s11] sm:$0x1]
    %13 = vrot.lane.b32.xlu0 %v12, 112
    %v14 = vpop.permute.xlu0 %13
    %vm15 = vcmask 982912
    %16 = vst.msk [vmem:[#allocation0] sm:$0x1] %vm15, %v14
    %s17 = scalar_lea.vmem %s0, 13
    %v18 = vld [vmem:[%s17] sm:$0x1]
    %19 = vrot.lane.b32.xlu0 %v18, 104
    %v20 = vpop.permute.xlu0 %19
    %vm21 = vcmask 917312
    %22 = vst.msk [vmem:[#allocation0] sm:$0x1] %vm21, %v20
    %s23 = scalar_lea.vmem %s0, 12
    %v24 = vld [vmem:[%s23] sm:$0x1]
    %25 = vrot.lane.b32.xlu0 %v24, 96
    %v26 = vpop.permute.xlu0 %25
    %vm27 = vcmask 851712
    %28 = vst.msk [vmem:[#allocation0] sm:$0x1] %vm27, %v26
    %s29 = scalar_lea.vmem %s0, 11
    %v30 = vld [vmem:[%s29] sm:$0x1]
    %31 = vrot.lane.b32.xlu0 %v30, 88
    %v32 = vpop.permute.xlu0 %31
    %vm33 = vcmask 786112
    %34 = vst.msk [vmem:[#allocation0] sm:$0x1] %vm33, %v32
    %s35 = scalar_lea.vmem %s0, 10
    %v36 = vld [vmem:[%s35] sm:$0x1]
    %37 = vrot.lane.b32.xlu0 %v36, 80
    %v38 = vpop.permute.xlu0 %37
    %vm39 = vcmask 720512
    %40 = vst.msk [vmem:[#allocation0] sm:$0x1] %vm39, %v38
    %s41 = scalar_lea.vmem %s0, 9
    %v42 = vld [vmem:[%s41] sm:$0x1]
    %43 = vrot.lane.b32.xlu0 %v42, 72
    %v44 = vpop.permute.xlu0 %43
    %vm45 = vcmask 654912
    %46 = vst.msk [vmem:[#allocation0] sm:$0x1] %vm45, %v44
    %s47 = scalar_lea.vmem %s0, 8
    %v48 = vld [vmem:[%s47] sm:$0x1]
    %49 = vrot.lane.b32.xlu0 %v48, 64
    %v50 = vpop.permute.xlu0 %49
    %vm51 = vcmask 589312
    %52 = vst.msk [vmem:[#allocation0] sm:$0x1] %vm51, %v50
    %s53 = scalar_lea.vmem %s0, 7
    %v54 = vld [vmem:[%s53] sm:$0x1]
    %55 = vrot.lane.b32.xlu0 %v54, 56
    %v56 = vpop.permute.xlu0 %55
    %vm57 = vcmask 523712
    %58 = vst.msk [vmem:[#allocation0] sm:$0x1] %vm57, %v56
    %s59 = scalar_lea.vmem %s0, 6
    %v60 = vld [vmem:[%s59] sm:$0x1]
    %61 = vrot.lane.b32.xlu0 %v60, 48
    %v62 = vpop.permute.xlu0 %61
    %vm63 = vcmask 458112
    %64 = vst.msk [vmem:[#allocation0] sm:$0x1] %vm63, %v62
    %s65 = scalar_lea.vmem %s0, 5
    %v66 = vld [vmem:[%s65] sm:$0x1]
    %67 = vrot.lane.b32.xlu0 %v66, 40
    %v68 = vpop.permute.xlu0 %67
    %vm69 = vcmask 392512
    %70 = vst.msk [vmem:[#allocation0] sm:$0x1] %vm69, %v68
    %s71 = scalar_lea.vmem %s0, 4
    %v72 = vld [vmem:[%s71] sm:$0x1]
    %73 = vrot.lane.b32.xlu0 %v72, 32
    %v74 = vpop.permute.xlu0 %73
    %vm75 = vcmask 326912
    %76 = vst.msk [vmem:[#allocation0] sm:$0x1] %vm75, %v74
    %s77 = scalar_lea.vmem %s0, 3
    %v78 = vld [vmem:[%s77] sm:$0x1]
    %79 = vrot.lane.b32.xlu0 %v78, 24
    %v80 = vpop.permute.xlu0 %79
    %vm81 = vcmask 261312
    %82 = vst.msk [vmem:[#allocation0] sm:$0x1] %vm81, %v80
    %s83 = scalar_lea.vmem %s0, 2
    %v84 = vld [vmem:[%s83] sm:$0x1]
    %85 = vrot.lane.b32.xlu0 %v84, 16
    %v86 = vpop.permute.xlu0 %85
    %vm87 = vcmask 195712
    %88 = vst.msk [vmem:[#allocation0] sm:$0x1] %vm87, %v86
    %s89 = scalar_lea.vmem %s0, 1
    %v90 = vld [vmem:[%s89] sm:$0x1]
    %91 = vrot.lane.b32.xlu0 %v90, 8
    %v92 = vpop.permute.xlu0 %91
    %vm93 = vcmask 130112
    %94 = vst.msk [vmem:[#allocation0] sm:$0x1] %vm93, %v92
    %s96 = sshll.u32 1, 1
    %s97 = ssub.s32 %s96, 1
    %v99 = vld [vmem:[#allocation0] sm:%s97]
    %s100 = sshll.u32 1, 1
    %s101 = ssub.s32 %s100, 1
    %102 = vst [vmem:[%s1] sm:%s101] %v99

// kernel: block_forward.3
$region0: #{block_forward.3}
  #allocation0 [shape = 'u32[]', space=smem, size = 0x4, offset = 0x4, fixed_abs, tag = 'smem constant byte address 0x4 - core index']
  #allocation1 [shape = 'u32[144,128]{1,0:T(1,128)}', space=vmem, size = 0x12000, scoped, tag = 'internal scratch']
  #allocation2 [shape = 'f32[18,144]{1,0:T(8,128)}', space=vmem, size = 0x6000, scoped, tag = 'scratch operand']
  %s0 = inlined_call_operand.vmem [shape: f32[2,16,128], index: 0, kind: input, shape index: {}]
  %s1 = inlined_call_operand.vmem [shape: f32[3,144,128], index: 1, kind: input, shape index: {}]
  %s2 = inlined_call_operand.vmem [shape: f32[2,16,128], index: 2, kind: output, shape index: {0}]
  %s3 = inlined_call_operand.vmem [shape: f32[2,2,128], index: 3, kind: output, shape index: {1}]
  %4 = xla_tuple %s2, %s3
  %s5 = sld [smem:[#allocation0]]
  $region49: #{block_forward.3} parent=0
    _
  %s7 = ssub.s32 1, %s5
  %s8 = scalar_select 0, %s7, %s5
  loop: start=0, step=1, limit=4
  $region2: #{block_forward.3} parent=0 // loop_pre_header
    _
  $region3: #{block_forward.3} parent=0 // loop_header
    %s10 = sphi 0, %s14
    %p11 = scmp.ge.s32.totalorder %s10, 4
    %s20 = sphi 0, %s22
    %s23 = sphi 0, %s20
    %s24 = sphi 0, %s23
    %s40 = sphi 0, %s24
    %s44 = sphi 0, %s44
    %s46 = sphi 0, %s44
    %s47 = sphi 0, %s46
    %s61 = sphi 0, %s47
    %s67 = sphi 0, %s69
    %s70 = sphi 0, %s67
    %s71 = sphi 0, %s70
    %s87 = sphi 0, %s71
    %s93 = sphi 0, %s95
    %s96 = sphi 0, %s93
    %s97 = sphi 0, %s96
    %s113 = sphi 0, %s97
  $region4: #{block_forward.3} parent=0 // loop_header_branch
    %13 = sbr.rel (%p11) target = $region8
  $region5: #{block_forward.3} parent=0 // loop_body
    %s15 = ssub.s32 %s10, 1
    %s16 = ssub.s32 %s10, 2
    %s17 = sadd.s32 %s10, 1
    %s18 = ssub.s32 %s10, %s17
    %p19 = scmp.eq.s32.totalorder %s18, 0
    %s21 = sadd.s32 %s20, 1
    %s22 = scalar_select %p19, %s20, %s21
    %p25 = pneg %p19
    %p26 = scmp.eq.s32.totalorder %s10, 1
    %p27 = por %p25, %p26
    %p28 = scmp.ne.s32.totalorder %s20, %s23
    %p29 = scmp.eq.s32.totalorder %s10, 0
    %p30 = por %p28, %p29
    %p31 = scmp.ne.s32.totalorder %s20, %s23
    %p32 = scmp.eq.s32.totalorder %s15, 1
    %p33 = por %p31, %p32
    %p34 = scmp.ne.s32.totalorder %s23, %s24
    %p35 = scmp.eq.s32.totalorder %s15, 0
    %p36 = por %p34, %p35
    %p37 = scmp.ne.s32.totalorder %s23, %s24
    %p38 = scmp.eq.s32.totalorder %s16, 1
    %p39 = por %p37, %p38
    %p41 = scmp.ne.s32.totalorder %s24, %s40
    %p42 = scmp.eq.s32.totalorder %s16, 0
    %p43 = por %p41, %p42
    %s45 = sadd.s32 %s44, 1
    %p48 = scmp.eq.s32.totalorder %s10, 1
    %p49 = scmp.ne.s32.totalorder %s44, %s46
    %p50 = scmp.eq.s32.totalorder %s10, 0
    %p51 = por %p49, %p50
    %p52 = scmp.ne.s32.totalorder %s44, %s46
    %p53 = scmp.eq.s32.totalorder %s15, 1
    %p54 = por %p52, %p53
    %p55 = scmp.ne.s32.totalorder %s46, %s47
    %p56 = scmp.eq.s32.totalorder %s15, 0
    %p57 = por %p55, %p56
    %p58 = scmp.ne.s32.totalorder %s46, %s47
    %p59 = scmp.eq.s32.totalorder %s16, 1
    %p60 = por %p58, %p59
    %p62 = scmp.ne.s32.totalorder %s47, %s61
    %p63 = scmp.eq.s32.totalorder %s16, 0
    %p64 = por %p62, %p63
    %s65 = ssub.s32 %s10, %s17
    %p66 = scmp.eq.s32.totalorder %s65, 0
    %s68 = sadd.s32 %s67, 1
    %s69 = scalar_select %p66, %s67, %s68
    %p72 = pneg %p66
    %p73 = scmp.eq.s32.totalorder %s10, 1
    %p74 = por %p72, %p73
    %p75 = scmp.ne.s32.totalorder %s67, %s70
    %p76 = scmp.eq.s32.totalorder %s10, 0
    %p77 = por %p75, %p76
    %p78 = scmp.ne.s32.totalorder %s67, %s70
    %p79 = scmp.eq.s32.totalorder %s15, 1
    %p80 = por %p78, %p79
    %p81 = scmp.ne.s32.totalorder %s70, %s71
    %p82 = scmp.eq.s32.totalorder %s15, 0
    %p83 = por %p81, %p82
    %p84 = scmp.ne.s32.totalorder %s70, %s71
    %p85 = scmp.eq.s32.totalorder %s16, 1
    %p86 = por %p84, %p85
    %p88 = scmp.ne.s32.totalorder %s71, %s87
    %p89 = scmp.eq.s32.totalorder %s16, 0
    %p90 = por %p88, %p89
    %s91 = ssub.s32 %s10, %s17
    %p92 = scmp.eq.s32.totalorder %s91, 0
    %s94 = sadd.s32 %s93, 1
    %s95 = scalar_select %p92, %s93, %s94
    %p98 = pneg %p92
    %p99 = scmp.eq.s32.totalorder %s10, 1
    %p100 = por %p98, %p99
    %p101 = scmp.ne.s32.totalorder %s93, %s96
    %p102 = scmp.eq.s32.totalorder %s10, 0
    %p103 = por %p101, %p102
    %p104 = scmp.ne.s32.totalorder %s93, %s96
    %p105 = scmp.eq.s32.totalorder %s15, 1
    %p106 = por %p104, %p105
    %p107 = scmp.ne.s32.totalorder %s96, %s97
    %p108 = scmp.eq.s32.totalorder %s15, 0
    %p109 = por %p107, %p108
    %p110 = scmp.ne.s32.totalorder %s96, %s97
    %p111 = scmp.eq.s32.totalorder %s16, 1
    %p112 = por %p110, %p111
    %p114 = scmp.ne.s32.totalorder %s97, %s113
    %p115 = scmp.eq.s32.totalorder %s16, 0
    %p116 = por %p114, %p115
    %p117 = scmp.le.s32.totalorder 1, %s10
    %p118 = scmp.lt.s32.totalorder %s10, 3
    %p119 = pnand %p117, %p118
    %p120 = pneg %p119
    // Predicated region
    $region9: #{block_forward.3} parent=5 // pred_check
      _
    $region10: #{block_forward.3} parent=5 // pred_check_branch
      %122 = sbr.rel (%p119) target = $region12
    $region11: #{block_forward.3} parent=5 // pred_region
      %s123 = ssub.s32 %s10, 1
      // Predicated region
      $region13: #{block_forward.3} parent=11 // pred_check
        %p124 = pneg %p57
      $region14: #{block_forward.3} parent=11 // pred_check_branch
        %126 = sbr.rel (%p124) target = $region16
      $region15: #{block_forward.3} parent=11 // pred_region
        _
      $region16: #{block_forward.3} parent=11 // pred_fallthru
        _
    $region12: #{block_forward.3} parent=5 // pred_fallthru
      _
    %p127 = scmp.lt.s32.totalorder %s10, 2
    // Predicated region
    $region17: #{block_forward.3} parent=5 // pred_check
      %p128 = pneg %p127
    $region18: #{block_forward.3} parent=5 // pred_check_branch
      %130 = sbr.rel (%p128) target = $region20
    $region19: #{block_forward.3} parent=5 // pred_region
      // Predicated region
      $region21: #{block_forward.3} parent=19 // pred_check
        %p131 = pneg %p30
      $region22: #{block_forward.3} parent=19 // pred_check_branch
        %133 = sbr.rel (%p131) target = $region24
      $region23: #{block_forward.3} parent=19 // pred_region
        %p134 = scmp.lt.s32.totalorder %s10, 1
        %s135 = scalar_select %p134, %s10, 1
        %s136 = smul.addr %s135, 2
        %s137 = smul.addr %s136, 8
        %s138 = scalar_lea.vmem %s0, %s137
      $region24: #{block_forward.3} parent=19 // pred_fallthru
        _
    $region20: #{block_forward.3} parent=5 // pred_fallthru
      _
    %p139 = scmp.le.s32.totalorder 1, %s10
    %p140 = scmp.lt.s32.totalorder %s10, 3
    %p141 = pnand %p139, %p140
    %p142 = pneg %p141
    // Predicated region
    $region25: #{block_forward.3} parent=5 // pred_check
      _
    $region26: #{block_forward.3} parent=5 // pred_check_branch
      %144 = sbr.rel (%p141) target = $region28
    $region27: #{block_forward.3} parent=5 // pred_region
      %s145 = ssub.s32 %s10, 1
      %p146 = scmp.lt.s32.totalorder %s15, 1
      %s147 = scalar_select %p146, %s15, 1
      %s148 = smul.addr %s147, 2
      %s149 = smul.addr %s148, 8
      %s150 = scalar_lea.vmem %s0, %s149
      %p151 = pneg %p36
      %p152 = pneg %p33
      %p153 = pneg %p57
      %p154 = pneg %p54
      %p155 = pneg %p83
      %p156 = pneg %p80
      %p157 = scmp.lt.s32.totalorder %s15, 1
      %s158 = scalar_select %p157, %s15, 1
      %s159 = smul.addr %s158, 2
      %s160 = smul.addr %s159, 8
      %s161 = scalar_lea.vmem %s2, %s160
      %p162 = pneg %p109
      %p163 = pneg %p106
      %p164 = scmp.lt.s32.totalorder %s15, 1
      %s165 = scalar_select %p164, %s15, 1
      %s166 = smul.addr %s165, 2
      %s167 = scalar_lea.vmem %s3, %s166
      %p168 = scmp.lt.s32.totalorder %s15, 1
      %s169 = scalar_select %p168, %s15, 1
      %s170 = smul.addr %s169, 2
      %s171 = smul.addr %s170, 8
      %s172 = scalar_lea.vmem %s0, %s171
      %p173 = scmp.lt.s32.totalorder %s15, 1
      %s174 = scalar_select %p173, %s15, 1
      %s175 = smul.addr %s174, 2
      %s176 = smul.addr %s175, 8
      %s177 = scalar_lea.vmem %s2, %s176
      %p178 = scmp.lt.s32.totalorder %s15, 1
      %s179 = scalar_select %p178, %s15, 1
      %s180 = smul.addr %s179, 2
      %s181 = scalar_lea.vmem %s3, %s180
      %v182 = vld [vmem:[%s172] sm:$0xff]
      %v183 = vld [vmem:[%s172 + $0x8] sm:$0xff]
      %v184 = vlaneseq
      %vm185 = vcmp.ge.s32.totalorder %v184, 0
      %vm186 = vcmp.lt.s32.totalorder %v184, 144
      %vm187 = vmand %vm185, %vm186
      %188 = vst.msk [vmem:[#allocation2] ss:$8 sm:$0x3] %vm187, 0.0
      %189 = vst.msk [vmem:[#allocation2] ss:$8 sm:$0x0] %vm187, 0.0
      %s190 = scalar_lea.vmem [#allocation2], 33
      %191 = vst.msk [vmem:[%s190] ss:$8 sm:$0x3] %vm187, 0.0
      %192 = vst.msk [vmem:[%s190] ss:$8 sm:$0x0] %vm187, 0.0
      %vm193 = vcmask 64513
      %194 = vst.msk [vmem:[#allocation2] sm:$0xfe] %vm193, 0.0
      %vm195 = vcmask 64512
      %196 = vst.msk [vmem:[#allocation2 + $0x10] sm:$0xff] %vm195, 0.0
      %vm197 = vcmask 57344
      %198 = vst.msk [vmem:[#allocation2 + $0x20] sm:$0x1] %vm197, 0.0
      %vm199 = vcmask 130113
      %200 = vst.msk [vmem:[#allocation2 + $0x8] sm:$0xfe] %vm199, 0.0
      %vm201 = vcmask 130112
      %202 = vst.msk [vmem:[#allocation2 + $0x18] sm:$0xff] %vm201, 0.0
      %vm203 = vcmask 122944
      %204 = vst.msk [vmem:[#allocation2 + $0x28] sm:$0x1] %vm203, 0.0
      %vm207 = vcmask 1040384
      %v208 = vrot.slane %v182, 7
      %v209 = vrot.slane %v183, 7
      %v210 = vsel %vm207, %v208, %v209
      %211 = vrot.lane.b32.xlu0 %v208, 8
      %v212 = vpop.permute.xlu0 %211
      %213 = vrot.lane.b32.xlu0 %v210, 8
      %v214 = vpop.permute.xlu0 %213
      %215 = vrot.lane.b32.xlu0 %v209, 8
      %v216 = vpop.permute.xlu0 %215
      %vm220 = vcmask 1047617
      %221 = vst.msk [vmem:[#allocation2] sm:$0xfe] %vm220, %v212
      %222 = vst.msk [vmem:[#allocation2 + $0x8] sm:$0xfe] %vm193, %v212
      %vm223 = vcmask 1047616
      %224 = vst.msk [vmem:[#allocation2 + $0x10] sm:$0xff] %vm223, %v214
      %225 = vst.msk [vmem:[#allocation2 + $0x18] sm:$0xff] %vm195, %v214
      %vm226 = vcmask 1040448
      %227 = vst.msk [vmem:[#allocation2 + $0x20] sm:$0x1] %vm226, %v216
      %228 = vst.msk [vmem:[#allocation2 + $0x28] sm:$0x1] %vm197, %v216
      %v229 = vld [vmem:[#allocation2] sm:$0xff]
      %v230 = vld [vmem:[#allocation2 + $0x8] sm:$0xff]
      %v231 = vld [vmem:[#allocation2 + $0x10] sm:$0xff]
      %v232 = vld [vmem:[#allocation2 + $0x18] sm:$0xff]
      %v233 = vld [vmem:[%s1] sm:$0xff]
      %v234 = vld [vmem:[%s1 + $0x8] sm:$0xff]
      %v235 = vld [vmem:[%s1 + $0x10] sm:$0xff]
      %v236 = vld [vmem:[%s1 + $0x18] sm:$0xff]
      %v237 = vld [vmem:[%s1 + $0x20] sm:$0xff]
      %v238 = vld [vmem:[%s1 + $0x28] sm:$0xff]
      %v239 = vld [vmem:[%s1 + $0x30] sm:$0xff]
      %v240 = vld [vmem:[%s1 + $0x38] sm:$0xff]
      %v241 = vld [vmem:[%s1 + $0x40] sm:$0xff]
      %v242 = vld [vmem:[%s1 + $0x48] sm:$0xff]
      %v243 = vld [vmem:[%s1 + $0x50] sm:$0xff]
      %v244 = vld [vmem:[%s1 + $0x58] sm:$0xff]
      %v245 = vld [vmem:[%s1 + $0x60] sm:$0xff]
      %v246 = vld [vmem:[%s1 + $0x68] sm:$0xff]
      %v247 = vld [vmem:[%s1 + $0x70] sm:$0xff]
      %v248 = vld [vmem:[%s1 + $0x78] sm:$0xff]
      %v249 = vld [vmem:[%s1 + $0x80] sm:$0xff]
      %v250 = vld [vmem:[%s1 + $0x88] sm:$0xff]
      %v251 = vld [vmem:[#allocation2] sm:$0xfe]
      %v252 = vld [vmem:[#allocation2 + $0x8] sm:$0xfe]
      %v253 = vld [vmem:[#allocation2 + $0x20] sm:$0x1]
      %v254 = vld [vmem:[#allocation2 + $0x28] sm:$0x1]
      %s255 = scalar_lea.vmem %s1, 144
      %v256 = vld [vmem:[%s255] sm:$0xff]
      %v257 = vld [vmem:[%s255 + $0x8] sm:$0xff]
      %v258 = vld [vmem:[%s255 + $0x10] sm:$0xff]
      %v259 = vld [vmem:[%s255 + $0x18] sm:$0xff]
      %v260 = vld [vmem:[%s255 + $0x20] sm:$0xff]
      %v261 = vld [vmem:[%s255 + $0x28] sm:$0xff]
      %v262 = vld [vmem:[%s255 + $0x30] sm:$0xff]
      %v263 = vld [vmem:[%s255 + $0x38] sm:$0xff]
      %v264 = vld [vmem:[%s255 + $0x40] sm:$0xff]
      %v265 = vld [vmem:[%s255 + $0x48] sm:$0xff]
      %v266 = vld [vmem:[%s255 + $0x50] sm:$0xff]
      %v267 = vld [vmem:[%s255 + $0x58] sm:$0xff]
      %v268 = vld [vmem:[%s255 + $0x60] sm:$0xff]
      %v269 = vld [vmem:[%s255 + $0x68] sm:$0xff]
      %v270 = vld [vmem:[%s255 + $0x70] sm:$0xff]
      %v271 = vld [vmem:[%s255 + $0x78] sm:$0xff]
      %v272 = vld [vmem:[%s255 + $0x80] sm:$0xff]
      %v273 = vld [vmem:[%s255 + $0x88] sm:$0xff]
      %vm280 = vcmask 1046528
      %v281 = vrot.slane %v251, 1
      %v282 = vrot.slane %v231, 1
      %v283 = vsel %vm280, %v281, %v282
      %v284 = vrot.slane %v252, 1
      %v285 = vrot.slane %v232, 1
      %v286 = vsel %vm280, %v284, %v285
      %v287 = vrot.slane %v253, 1
      %v288 = vsel %vm280, %v282, %v287
      %v289 = vrot.slane %v254, 1
      %v290 = vsel %vm280, %v285, %v289
      %vm293 = vcmask 130048
      %v294 = vsel %vm293, %v286, 0
      %v296 = vsel %vm293, %v290, 0
      %298 = vmatprep.subr.mxu0 0.0
      %299 = vmatpush1.msra.mxu0 %v271
      %300 = vmatprep.subr.mxu0 0.0
      %301 = vmatpush1.msra.mxu0 %v270
      %302 = vmatprep.subr.mxu0 0.0
      %303 = vmatpush1.msra.mxu0 %v269
      %304 = vmatprep.subr.mxu0 0.0
      %305 = vmatpush1.msra.mxu0 %v268
      %306 = vmatprep.subr.mxu0 0.0
      %307 = vmatpush1.msra.mxu0 %v267
      %308 = vmatprep.subr.mxu0 0.0
      %309 = vmatpush1.msra.mxu0 %v266
      %310 = vmatprep.subr.mxu0 0.0
      %311 = vmatpush1.msra.mxu0 %v265
      %312 = vmatprep.subr.mxu0 0.0
      %313 = vmatpush1.msra.mxu0 %v264
      %314 = vmatprep.subr.mxu0 0.0
      %315 = vmatpush1.msra.mxu0 %v263
      %316 = vmatprep.subr.mxu0 0.0
      %317 = vmatpush1.msra.mxu0 %v262
      %318 = vmatprep.subr.mxu0 0.0
      %319 = vmatpush1.msra.mxu0 %v261
      %320 = vmatprep.subr.mxu0 0.0
      %321 = vmatpush1.msra.mxu0 %v260
      %322 = vmatprep.subr.mxu0 0.0
      %323 = vmatpush1.msra.mxu0 %v259
      %324 = vmatprep.subr.mxu0 0.0
      %325 = vmatpush1.msra.mxu0 %v258
      %326 = vmatprep.subr.mxu0 0.0
      %327 = vmatpush1.msra.mxu0 %v257
      %328 = vmatprep.subr.mxu0 0.0
      %329 = vmatpush1.msra.mxu0 %v256
      %330 = vmatprep.subr.mxu0 0.0
      %331 = vmatpush2.msra.mxu0 0.0
      %332 = vmatprep.subr.mxu0 0.0
      %333 = vmatpush2.msra.mxu0 0.0
      %334 = vmatprep.subr.mxu0 0.0
      %335 = vmatpush2.msra.mxu0 0.0
      %336 = vmatprep.subr.mxu0 0.0
      %337 = vmatpush2.msra.mxu0 0.0
      %338 = vmatprep.subr.mxu0 0.0
      %339 = vmatpush2.msra.mxu0 0.0
      %340 = vmatprep.subr.mxu0 0.0
      %341 = vmatpush2.msra.mxu0 0.0
      %342 = vmatprep.subr.mxu0 0.0
      %343 = vmatpush2.msra.mxu0 0.0
      %344 = vmatprep.subr.mxu0 0.0
      %345 = vmatpush2.msra.mxu0 0.0
      %346 = vmatprep.subr.mxu0 0.0
      %347 = vmatpush2.msra.mxu0 0.0
      %348 = vmatprep.subr.mxu0 0.0
      %349 = vmatpush2.msra.mxu0 0.0
      %350 = vmatprep.subr.mxu0 0.0
      %351 = vmatpush2.msra.mxu0 0.0
      %352 = vmatprep.subr.mxu0 0.0
      %353 = vmatpush2.msra.mxu0 0.0
      %354 = vmatprep.subr.mxu0 0.0
      %355 = vmatpush2.msra.mxu0 0.0
      %356 = vmatprep.subr.mxu0 0.0
      %357 = vmatpush2.msra.mxu0 0.0
      %358 = vmatprep.subr.mxu0 0.0
      %359 = vmatpush2.msra.mxu0 %v273
      %360 = vmatprep.subr.mxu0 0.0
      %361 = vmatpush2.msra.mxu0 %v272
      %362 = vmatprep.mubr.f32.mxu0 %v294
      %363 = vmatmul.mubr.f32.gmra.mxu0 %v283
      %v364 = vpop.f32.mrf.mxu0
      %v365 = vadd.f32 0.0, %v364
      %v366 = vpop.f32.mrf.mxu0
      %367 = vmatprep.mubr.f32.mxu0 %v296
      %368 = vmatmul.mubr.f32.gmra.mxu0 %v288
      %v369 = vpop.f32.mrf.mxu0
      %v370 = vadd.f32 0.0, %v369
      %v371 = vpop.f32.mrf.mxu0
      %372 = vdwg.mxu0
      %v374 = vsel %vm293, %v230, 0
      %v376 = vsel %vm293, %v232, 0
      %378 = vmatprep.subr.mxu0 0.0
      %379 = vmatpush1.msra.mxu0 %v248
      %380 = vmatprep.subr.mxu0 0.0
      %381 = vmatpush1.msra.mxu0 %v247
      %382 = vmatprep.subr.mxu0 0.0
      %383 = vmatpush1.msra.mxu0 %v246
      %384 = vmatprep.subr.mxu0 0.0
      %385 = vmatpush1.msra.mxu0 %v245
      %386 = vmatprep.subr.mxu0 0.0
      %387 = vmatpush1.msra.mxu0 %v244
      %388 = vmatprep.subr.mxu0 0.0
      %389 = vmatpush1.msra.mxu0 %v243
      %390 = vmatprep.subr.mxu0 0.0
      %391 = vmatpush1.msra.mxu0 %v242
      %392 = vmatprep.subr.mxu0 0.0
      %393 = vmatpush1.msra.mxu0 %v241
      %394 = vmatprep.subr.mxu0 0.0
      %395 = vmatpush1.msra.mxu0 %v240
      %396 = vmatprep.subr.mxu0 0.0
      %397 = vmatpush1.msra.mxu0 %v239
      %398 = vmatprep.subr.mxu0 0.0
      %399 = vmatpush1.msra.mxu0 %v238
      %400 = vmatprep.subr.mxu0 0.0
      %401 = vmatpush1.msra.mxu0 %v237
      %402 = vmatprep.subr.mxu0 0.0
      %403 = vmatpush1.msra.mxu0 %v236
      %404 = vmatprep.subr.mxu0 0.0
      %405 = vmatpush1.msra.mxu0 %v235
      %406 = vmatprep.subr.mxu0 0.0
      %407 = vmatpush1.msra.mxu0 %v234
      %408 = vmatprep.subr.mxu0 0.0
      %409 = vmatpush1.msra.mxu0 %v233
      %410 = vmatprep.subr.mxu0 0.0
      %411 = vmatpush2.msra.mxu0 0.0
      %412 = vmatprep.subr.mxu0 0.0
      %413 = vmatpush2.msra.mxu0 0.0
      %414 = vmatprep.subr.mxu0 0.0
      %415 = vmatpush2.msra.mxu0 0.0
      %416 = vmatprep.subr.mxu0 0.0
      %417 = vmatpush2.msra.mxu0 0.0
      %418 = vmatprep.subr.mxu0 0.0
      %419 = vmatpush2.msra.mxu0 0.0
      %420 = vmatprep.subr.mxu0 0.0
      %421 = vmatpush2.msra.mxu0 0.0
      %422 = vmatprep.subr.mxu0 0.0
      %423 = vmatpush2.msra.mxu0 0.0
      %424 = vmatprep.subr.mxu0 0.0
      %425 = vmatpush2.msra.mxu0 0.0
      %426 = vmatprep.subr.mxu0 0.0
      %427 = vmatpush2.msra.mxu0 0.0
      %428 = vmatprep.subr.mxu0 0.0
      %429 = vmatpush2.msra.mxu0 0.0
      %430 = vmatprep.subr.mxu0 0.0
      %431 = vmatpush2.msra.mxu0 0.0
      %432 = vmatprep.subr.mxu0 0.0
      %433 = vmatpush2.msra.mxu0 0.0
      %434 = vmatprep.subr.mxu0 0.0
      %435 = vmatpush2.msra.mxu0 0.0
      %436 = vmatprep.subr.mxu0 0.0
      %437 = vmatpush2.msra.mxu0 0.0
      %438 = vmatprep.subr.mxu0 0.0
      %439 = vmatpush2.msra.mxu0 %v250
      %440 = vmatprep.subr.mxu0 0.0
      %441 = vmatpush2.msra.mxu0 %v249
      %442 = vmatprep.mubr.f32.mxu0 %v374
      %443 = vmatmul.mubr.f32.gmra.mxu0 %v229
      %v444 = vpop.f32.mrf.mxu0
      %v445 = vadd.f32 %v365, %v444
      %v446 = vpop.f32.mrf.mxu0
      %447 = vmatprep.mubr.f32.mxu0 %v376
      %448 = vmatmul.mubr.f32.gmra.mxu0 %v231
      %v449 = vpop.f32.mrf.mxu0
      %v450 = vadd.f32 %v370, %v449
      %v451 = vpop.f32.mrf.mxu0
      %452 = vdwg.mxu0
      %v453 = vld [vmem:[#allocation2] sm:$0xfc]
      %v454 = vld [vmem:[#allocation2 + $0x8] sm:$0xfc]
      %v455 = vld [vmem:[#allocation2 + $0x20] sm:$0x3]
      %v456 = vld [vmem:[#allocation2 + $0x28] sm:$0x3]
      %s457 = scalar_lea.vmem %s1, 288
      %v458 = vld [vmem:[%s457] sm:$0xff]
      %v459 = vld [vmem:[%s457 + $0x8] sm:$0xff]
      %v460 = vld [vmem:[%s457 + $0x10] sm:$0xff]
      %v461 = vld [vmem:[%s457 + $0x18] sm:$0xff]
      %v462 = vld [vmem:[%s457 + $0x20] sm:$0xff]
      %v463 = vld [vmem:[%s457 + $0x28] sm:$0xff]
      %v464 = vld [vmem:[%s457 + $0x30] sm:$0xff]
      %v465 = vld [vmem:[%s457 + $0x38] sm:$0xff]
      %v466 = vld [vmem:[%s457 + $0x40] sm:$0xff]
      %v467 = vld [vmem:[%s457 + $0x48] sm:$0xff]
      %v468 = vld [vmem:[%s457 + $0x50] sm:$0xff]
      %v469 = vld [vmem:[%s457 + $0x58] sm:$0xff]
      %v470 = vld [vmem:[%s457 + $0x60] sm:$0xff]
      %v471 = vld [vmem:[%s457 + $0x68] sm:$0xff]
      %v472 = vld [vmem:[%s457 + $0x70] sm:$0xff]
      %v473 = vld [vmem:[%s457 + $0x78] sm:$0xff]
      %v474 = vld [vmem:[%s457 + $0x80] sm:$0xff]
      %v475 = vld [vmem:[%s457 + $0x88] sm:$0xff]
      %vm480 = vcmask 1045504
      %v481 = vrot.slane %v453, 2
      %v482 = vrot.slane %v231, 2
      %v483 = vsel %vm480, %v481, %v482
      %v484 = vrot.slane %v454, 2
      %v485 = vrot.slane %v232, 2
      %v486 = vsel %vm480, %v484, %v485
      %v487 = vrot.slane %v455, 2
      %v488 = vsel %vm480, %v482, %v487
      %v489 = vrot.slane %v456, 2
      %v490 = vsel %vm480, %v485, %v489
      %v493 = vsel %vm293, %v486, 0
      %v495 = vsel %vm293, %v490, 0
      %497 = vmatprep.subr.mxu0 0.0
      %498 = vmatpush1.msra.mxu0 %v473
      %499 = vmatprep.subr.mxu0 0.0
      %500 = vmatpush1.msra.mxu0 %v472
      %501 = vmatprep.subr.mxu0 0.0
      %502 = vmatpush1.msra.mxu0 %v471
      %503 = vmatprep.subr.mxu0 0.0
      %504 = vmatpush1.msra.mxu0 %v470
      %505 = vmatprep.subr.mxu0 0.0
      %506 = vmatpush1.msra.mxu0 %v469
      %507 = vmatprep.subr.mxu0 0.0
      %508 = vmatpush1.msra.mxu0 %v468
      %509 = vmatprep.subr.mxu0 0.0
      %510 = vmatpush1.msra.mxu0 %v467
      %511 = vmatprep.subr.mxu0 0.0
      %512 = vmatpush1.msra.mxu0 %v466
      %513 = vmatprep.subr.mxu0 0.0
      %514 = vmatpush1.msra.mxu0 %v465
      %515 = vmatprep.subr.mxu0 0.0
      %516 = vmatpush1.msra.mxu0 %v464
      %517 = vmatprep.subr.mxu0 0.0
      %518 = vmatpush1.msra.mxu0 %v463
      %519 = vmatprep.subr.mxu0 0.0
      %520 = vmatpush1.msra.mxu0 %v462
      %521 = vmatprep.subr.mxu0 0.0
      %522 = vmatpush1.msra.mxu0 %v461
      %523 = vmatprep.subr.mxu0 0.0
      %524 = vmatpush1.msra.mxu0 %v460
      %525 = vmatprep.subr.mxu0 0.0
      %526 = vmatpush1.msra.mxu0 %v459
      %527 = vmatprep.subr.mxu0 0.0
      %528 = vmatpush1.msra.mxu0 %v458
      %529 = vmatprep.subr.mxu0 0.0
      %530 = vmatpush2.msra.mxu0 0.0
      %531 = vmatprep.subr.mxu0 0.0
      %532 = vmatpush2.msra.mxu0 0.0
      %533 = vmatprep.subr.mxu0 0.0
      %534 = vmatpush2.msra.mxu0 0.0
      %535 = vmatprep.subr.mxu0 0.0
      %536 = vmatpush2.msra.mxu0 0.0
      %537 = vmatprep.subr.mxu0 0.0
      %538 = vmatpush2.msra.mxu0 0.0
      %539 = vmatprep.subr.mxu0 0.0
      %540 = vmatpush2.msra.mxu0 0.0
      %541 = vmatprep.subr.mxu0 0.0
      %542 = vmatpush2.msra.mxu0 0.0
      %543 = vmatprep.subr.mxu0 0.0
      %544 = vmatpush2.msra.mxu0 0.0
      %545 = vmatprep.subr.mxu0 0.0
      %546 = vmatpush2.msra.mxu0 0.0
      %547 = vmatprep.subr.mxu0 0.0
      %548 = vmatpush2.msra.mxu0 0.0
      %549 = vmatprep.subr.mxu0 0.0
      %550 = vmatpush2.msra.mxu0 0.0
      %551 = vmatprep.subr.mxu0 0.0
      %552 = vmatpush2.msra.mxu0 0.0
      %553 = vmatprep.subr.mxu0 0.0
      %554 = vmatpush2.msra.mxu0 0.0
      %555 = vmatprep.subr.mxu0 0.0
      %556 = vmatpush2.msra.mxu0 0.0
      %557 = vmatprep.subr.mxu0 0.0
      %558 = vmatpush2.msra.mxu0 %v475
      %559 = vmatprep.subr.mxu0 0.0
      %560 = vmatpush2.msra.mxu0 %v474
      %561 = vmatprep.mubr.f32.mxu0 %v493
      %562 = vmatmul.mubr.f32.gmra.mxu0 %v483
      %v563 = vpop.f32.mrf.mxu0
      %v564 = vadd.f32 0.0, %v563
      %v565 = vpop.f32.mrf.mxu0
      %566 = vmatprep.mubr.f32.mxu0 %v495
      %567 = vmatmul.mubr.f32.gmra.mxu0 %v488
      %v568 = vpop.f32.mrf.mxu0
      %v569 = vadd.f32 0.0, %v568
      %v570 = vpop.f32.mrf.mxu0
      %571 = vdwg.mxu0
      %v572 = vadd.f32 %v445, %v564
      %v573 = vadd.f32 %v450, %v569
      %574 = vst [vmem:[%s177] sm:$0xff] %v572
      %575 = vst [vmem:[%s177 + $0x8] sm:$0xff] %v573
      %v576 = vadd.f32 %v572, %v573
      %v577 = vrot.slane %v576, 4
      %v578 = vadd.f32 %v576, %v577
      %v579 = vrot.slane %v578, 2
      %v580 = vadd.f32 %v578, %v579
      %v581 = vrot.slane %v580, 1
      %v582 = vadd.f32 %v580, %v581
      %583 = vst [vmem:[%s181] sm:$0x1] %v582
      %v584 = vmul.f32 %v572, %v572
      %v585 = vmul.f32 %v573, %v573
      %v586 = vadd.f32 %v584, %v585
      %v587 = vrot.slane %v586, 4
      %v588 = vadd.f32 %v586, %v587
      %v589 = vrot.slane %v588, 2
      %v590 = vadd.f32 %v588, %v589
      %v591 = vrot.slane %v590, 1
      %v592 = vadd.f32 %v590, %v591
      %593 = vst [vmem:[%s181 + $0x1] sm:$0x1] %v592
      %p594 = scmp.lt.s32.totalorder %s15, 1
      %s595 = scalar_select %p594, %s15, 1
      %s596 = smul.addr %s595, 2
      %s597 = smul.addr %s596, 8
      %s598 = scalar_lea.vmem %s2, %s597
      %p599 = scmp.lt.s32.totalorder %s15, 1
      %s600 = scalar_select %p599, %s15, 1
      %s601 = smul.addr %s600, 2
      %s602 = scalar_lea.vmem %s3, %s601
      // Predicated region
      $region29: #{block_forward.3} parent=27 // pred_check
        %p603 = pneg %p80
      $region30: #{block_forward.3} parent=27 // pred_check_branch
        %605 = sbr.rel (%p603) target = $region32
      $region31: #{block_forward.3} parent=27 // pred_region
        _
      $region32: #{block_forward.3} parent=27 // pred_fallthru
        _
      // Predicated region
      $region33: #{block_forward.3} parent=27 // pred_check
        %p606 = pneg %p106
      $region34: #{block_forward.3} parent=27 // pred_check_branch
        %608 = sbr.rel (%p606) target = $region36
      $region35: #{block_forward.3} parent=27 // pred_region
        _
      $region36: #{block_forward.3} parent=27 // pred_fallthru
        _
    $region28: #{block_forward.3} parent=5 // pred_fallthru
      _
    %p609 = scmp.le.s32.totalorder 2, %s10
    // Predicated region
    $region37: #{block_forward.3} parent=5 // pred_check
      %p610 = pneg %p609
    $region38: #{block_forward.3} parent=5 // pred_check_branch
      %612 = sbr.rel (%p610) target = $region40
    $region39: #{block_forward.3} parent=5 // pred_region
      %s613 = ssub.s32 %s10, 2
      // Predicated region
      $region41: #{block_forward.3} parent=39 // pred_check
        %p614 = pneg %p86
      $region42: #{block_forward.3} parent=39 // pred_check_branch
        %616 = sbr.rel (%p614) target = $region44
      $region43: #{block_forward.3} parent=39 // pred_region
        %p617 = scmp.lt.s32.totalorder %s16, 1
        %s618 = scalar_select %p617, %s16, 1
        %s619 = smul.addr %s618, 2
        %s620 = smul.addr %s619, 8
        %s621 = scalar_lea.vmem %s2, %s620
      $region44: #{block_forward.3} parent=39 // pred_fallthru
        _
      // Predicated region
      $region45: #{block_forward.3} parent=39 // pred_check
        %p622 = pneg %p112
      $region46: #{block_forward.3} parent=39 // pred_check_branch
        %624 = sbr.rel (%p622) target = $region48
      $region47: #{block_forward.3} parent=39 // pred_region
        %p625 = scmp.lt.s32.totalorder %s16, 1
        %s626 = scalar_select %p625, %s16, 1
        %s627 = smul.addr %s626, 2
        %s628 = scalar_lea.vmem %s3, %s627
      $region48: #{block_forward.3} parent=39 // pred_fallthru
        _
    $region40: #{block_forward.3} parent=5 // pred_fallthru
      _
  $region6: #{block_forward.3} parent=0 // loop_footer
    %s14 = sadd.s32 1, %s10
  $region7: #{block_forward.3} parent=0 // loop_footer_branch
    %9 = sbr.rel target = $region3
  $region8: #{block_forward.3} parent=0 // loop_exit
    _

// kernel: block_forward.4
$region0: #{block_forward.4}
  #allocation0 [shape = 'u32[]', space=smem, size = 0x4, offset = 0x4, fixed_abs, tag = 'smem constant byte address 0x4 - core index']
  #allocation1 [shape = 'u32[144,128]{1,0:T(1,128)}', space=vmem, size = 0x12000, scoped, tag = 'internal scratch']
  #allocation2 [shape = 'f32[18,144]{1,0:T(8,128)}', space=vmem, size = 0x6000, scoped, tag = 'scratch operand']
  %s0 = inlined_call_operand.vmem [shape: f32[2,16,128], index: 0, kind: input, shape index: {}]
  %s1 = inlined_call_operand.vmem [shape: f32[1,128], index: 1, kind: input, shape index: {}]
  %s2 = inlined_call_operand.vmem [shape: f32[1,128], index: 2, kind: input, shape index: {}]
  %s3 = inlined_call_operand.vmem [shape: f32[3,144,128], index: 3, kind: input, shape index: {}]
  %s4 = inlined_call_operand.vmem [shape: f32[2,16,128], index: 4, kind: output, shape index: {0}]
  %s5 = inlined_call_operand.vmem [shape: f32[2,2,128], index: 5, kind: output, shape index: {1}]
  %6 = xla_tuple %s4, %s5
  %s7 = sld [smem:[#allocation0]]
  $region57: #{block_forward.4} parent=0
    _
  %s9 = ssub.s32 1, %s7
  %s10 = scalar_select 0, %s9, %s7
  loop: start=0, step=1, limit=4
  $region2: #{block_forward.4} parent=0 // loop_pre_header
    _
  $region3: #{block_forward.4} parent=0 // loop_header
    %s12 = sphi 0, %s16
    %p13 = scmp.ge.s32.totalorder %s12, 4
    %s22 = sphi 0, %s24
    %s25 = sphi 0, %s22
    %s26 = sphi 0, %s25
    %s42 = sphi 0, %s26
    %s46 = sphi 0, %s46
    %s48 = sphi 0, %s46
    %s49 = sphi 0, %s48
    %s63 = sphi 0, %s49
    %s67 = sphi 0, %s67
    %s69 = sphi 0, %s67
    %s70 = sphi 0, %s69
    %s84 = sphi 0, %s70
    %s88 = sphi 0, %s88
    %s90 = sphi 0, %s88
    %s91 = sphi 0, %s90
    %s105 = sphi 0, %s91
    %s111 = sphi 0, %s113
    %s114 = sphi 0, %s111
    %s115 = sphi 0, %s114
    %s131 = sphi 0, %s115
    %s137 = sphi 0, %s139
    %s140 = sphi 0, %s137
    %s141 = sphi 0, %s140
    %s157 = sphi 0, %s141
  $region4: #{block_forward.4} parent=0 // loop_header_branch
    %15 = sbr.rel (%p13) target = $region8
  $region5: #{block_forward.4} parent=0 // loop_body
    %s17 = ssub.s32 %s12, 1
    %s18 = ssub.s32 %s12, 2
    %s19 = sadd.s32 %s12, 1
    %s20 = ssub.s32 %s12, %s19
    %p21 = scmp.eq.s32.totalorder %s20, 0
    %s23 = sadd.s32 %s22, 1
    %s24 = scalar_select %p21, %s22, %s23
    %p27 = pneg %p21
    %p28 = scmp.eq.s32.totalorder %s12, 1
    %p29 = por %p27, %p28
    %p30 = scmp.ne.s32.totalorder %s22, %s25
    %p31 = scmp.eq.s32.totalorder %s12, 0
    %p32 = por %p30, %p31
    %p33 = scmp.ne.s32.totalorder %s22, %s25
    %p34 = scmp.eq.s32.totalorder %s17, 1
    %p35 = por %p33, %p34
    %p36 = scmp.ne.s32.totalorder %s25, %s26
    %p37 = scmp.eq.s32.totalorder %s17, 0
    %p38 = por %p36, %p37
    %p39 = scmp.ne.s32.totalorder %s25, %s26
    %p40 = scmp.eq.s32.totalorder %s18, 1
    %p41 = por %p39, %p40
    %p43 = scmp.ne.s32.totalorder %s26, %s42
    %p44 = scmp.eq.s32.totalorder %s18, 0
    %p45 = por %p43, %p44
    %s47 = sadd.s32 %s46, 1
    %p50 = scmp.eq.s32.totalorder %s12, 1
    %p51 = scmp.ne.s32.totalorder %s46, %s48
    %p52 = scmp.eq.s32.totalorder %s12, 0
    %p53 = por %p51, %p52
    %p54 = scmp.ne.s32.totalorder %s46, %s48
    %p55 = scmp.eq.s32.totalorder %s17, 1
    %p56 = por %p54, %p55
    %p57 = scmp.ne.s32.totalorder %s48, %s49
    %p58 = scmp.eq.s32.totalorder %s17, 0
    %p59 = por %p57, %p58
    %p60 = scmp.ne.s32.totalorder %s48, %s49
    %p61 = scmp.eq.s32.totalorder %s18, 1
    %p62 = por %p60, %p61
    %p64 = scmp.ne.s32.totalorder %s49, %s63
    %p65 = scmp.eq.s32.totalorder %s18, 0
    %p66 = por %p64, %p65
    %s68 = sadd.s32 %s67, 1
    %p71 = scmp.eq.s32.totalorder %s12, 1
    %p72 = scmp.ne.s32.totalorder %s67, %s69
    %p73 = scmp.eq.s32.totalorder %s12, 0
    %p74 = por %p72, %p73
    %p75 = scmp.ne.s32.totalorder %s67, %s69
    %p76 = scmp.eq.s32.totalorder %s17, 1
    %p77 = por %p75, %p76
    %p78 = scmp.ne.s32.totalorder %s69, %s70
    %p79 = scmp.eq.s32.totalorder %s17, 0
    %p80 = por %p78, %p79
    %p81 = scmp.ne.s32.totalorder %s69, %s70
    %p82 = scmp.eq.s32.totalorder %s18, 1
    %p83 = por %p81, %p82
    %p85 = scmp.ne.s32.totalorder %s70, %s84
    %p86 = scmp.eq.s32.totalorder %s18, 0
    %p87 = por %p85, %p86
    %s89 = sadd.s32 %s88, 1
    %p92 = scmp.eq.s32.totalorder %s12, 1
    %p93 = scmp.ne.s32.totalorder %s88, %s90
    %p94 = scmp.eq.s32.totalorder %s12, 0
    %p95 = por %p93, %p94
    %p96 = scmp.ne.s32.totalorder %s88, %s90
    %p97 = scmp.eq.s32.totalorder %s17, 1
    %p98 = por %p96, %p97
    %p99 = scmp.ne.s32.totalorder %s90, %s91
    %p100 = scmp.eq.s32.totalorder %s17, 0
    %p101 = por %p99, %p100
    %p102 = scmp.ne.s32.totalorder %s90, %s91
    %p103 = scmp.eq.s32.totalorder %s18, 1
    %p104 = por %p102, %p103
    %p106 = scmp.ne.s32.totalorder %s91, %s105
    %p107 = scmp.eq.s32.totalorder %s18, 0
    %p108 = por %p106, %p107
    %s109 = ssub.s32 %s12, %s19
    %p110 = scmp.eq.s32.totalorder %s109, 0
    %s112 = sadd.s32 %s111, 1
    %s113 = scalar_select %p110, %s111, %s112
    %p116 = pneg %p110
    %p117 = scmp.eq.s32.totalorder %s12, 1
    %p118 = por %p116, %p117
    %p119 = scmp.ne.s32.totalorder %s111, %s114
    %p120 = scmp.eq.s32.totalorder %s12, 0
    %p121 = por %p119, %p120
    %p122 = scmp.ne.s32.totalorder %s111, %s114
    %p123 = scmp.eq.s32.totalorder %s17, 1
    %p124 = por %p122, %p123
    %p125 = scmp.ne.s32.totalorder %s114, %s115
    %p126 = scmp.eq.s32.totalorder %s17, 0
    %p127 = por %p125, %p126
    %p128 = scmp.ne.s32.totalorder %s114, %s115
    %p129 = scmp.eq.s32.totalorder %s18, 1
    %p130 = por %p128, %p129
    %p132 = scmp.ne.s32.totalorder %s115, %s131
    %p133 = scmp.eq.s32.totalorder %s18, 0
    %p134 = por %p132, %p133
    %s135 = ssub.s32 %s12, %s19
    %p136 = scmp.eq.s32.totalorder %s135, 0
    %s138 = sadd.s32 %s137, 1
    %s139 = scalar_select %p136, %s137, %s138
    %p142 = pneg %p136
    %p143 = scmp.eq.s32.totalorder %s12, 1
    %p144 = por %p142, %p143
    %p145 = scmp.ne.s32.totalorder %s137, %s140
    %p146 = scmp.eq.s32.totalorder %s12, 0
    %p147 = por %p145, %p146
    %p148 = scmp.ne.s32.totalorder %s137, %s140
    %p149 = scmp.eq.s32.totalorder %s17, 1
    %p150 = por %p148, %p149
    %p151 = scmp.ne.s32.totalorder %s140, %s141
    %p152 = scmp.eq.s32.totalorder %s17, 0
    %p153 = por %p151, %p152
    %p154 = scmp.ne.s32.totalorder %s140, %s141
    %p155 = scmp.eq.s32.totalorder %s18, 1
    %p156 = por %p154, %p155
    %p158 = scmp.ne.s32.totalorder %s141, %s157
    %p159 = scmp.eq.s32.totalorder %s18, 0
    %p160 = por %p158, %p159
    %p161 = scmp.le.s32.totalorder 1, %s12
    %p162 = scmp.lt.s32.totalorder %s12, 3
    %p163 = pnand %p161, %p162
    %p164 = pneg %p163
    // Predicated region
    $region9: #{block_forward.4} parent=5 // pred_check
      _
    $region10: #{block_forward.4} parent=5 // pred_check_branch
      %166 = sbr.rel (%p163) target = $region12
    $region11: #{block_forward.4} parent=5 // pred_region
      %s167 = ssub.s32 %s12, 1
      // Predicated region
      $region13: #{block_forward.4} parent=11 // pred_check
        %p168 = pneg %p59
      $region14: #{block_forward.4} parent=11 // pred_check_branch
        %170 = sbr.rel (%p168) target = $region16
      $region15: #{block_forward.4} parent=11 // pred_region
        _
      $region16: #{block_forward.4} parent=11 // pred_fallthru
        _
      // Predicated region
      $region17: #{block_forward.4} parent=11 // pred_check
        %p171 = pneg %p80
      $region18: #{block_forward.4} parent=11 // pred_check_branch
        %173 = sbr.rel (%p171) target = $region20
      $region19: #{block_forward.4} parent=11 // pred_region
        _
      $region20: #{block_forward.4} parent=11 // pred_fallthru
        _
      // Predicated region
      $region21: #{block_forward.4} parent=11 // pred_check
        %p174 = pneg %p101
      $region22: #{block_forward.4} parent=11 // pred_check_branch
        %176 = sbr.rel (%p174) target = $region24
      $region23: #{block_forward.4} parent=11 // pred_region
        _
      $region24: #{block_forward.4} parent=11 // pred_fallthru
        _
    $region12: #{block_forward.4} parent=5 // pred_fallthru
      _
    %p177 = scmp.lt.s32.totalorder %s12, 2
    // Predicated region
    $region25: #{block_forward.4} parent=5 // pred_check
      %p178 = pneg %p177
    $region26: #{block_forward.4} parent=5 // pred_check_branch
      %180 = sbr.rel (%p178) target = $region28
    $region27: #{block_forward.4} parent=5 // pred_region
      // Predicated region
      $region29: #{block_forward.4} parent=27 // pred_check
        %p181 = pneg %p32
      $region30: #{block_forward.4} parent=27 // pred_check_branch
        %183 = sbr.rel (%p181) target = $region32
      $region31: #{block_forward.4} parent=27 // pred_region
        %p184 = scmp.lt.s32.totalorder %s12, 1
        %s185 = scalar_select %p184, %s12, 1
        %s186 = smul.addr %s185, 2
        %s187 = smul.addr %s186, 8
        %s188 = scalar_lea.vmem %s0, %s187
      $region32: #{block_forward.4} parent=27 // pred_fallthru
        _
    $region28: #{block_forward.4} parent=5 // pred_fallthru
      _
    %p189 = scmp.le.s32.totalorder 1, %s12
    %p190 = scmp.lt.s32.totalorder %s12, 3
    %p191 = pnand %p189, %p190
    %p192 = pneg %p191
    // Predicated region
    $region33: #{block_forward.4} parent=5 // pred_check
      _
    $region34: #{block_forward.4} parent=5 // pred_check_branch
      %194 = sbr.rel (%p191) target = $region36
    $region35: #{block_forward.4} parent=5 // pred_region
      %s195 = ssub.s32 %s12, 1
      %p196 = scmp.lt.s32.totalorder %s17, 1
      %s197 = scalar_select %p196, %s17, 1
      %s198 = smul.addr %s197, 2
      %s199 = smul.addr %s198, 8
      %s200 = scalar_lea.vmem %s0, %s199
      %p201 = pneg %p38
      %p202 = pneg %p35
      %p203 = pneg %p59
      %p204 = pneg %p56
      %p205 = pneg %p80
      %p206 = pneg %p77
      %p207 = pneg %p101
      %p208 = pneg %p98
      %p209 = pneg %p127
      %p210 = pneg %p124
      %p211 = scmp.lt.s32.totalorder %s17, 1
      %s212 = scalar_select %p211, %s17, 1
      %s213 = smul.addr %s212, 2
      %s214 = smul.addr %s213, 8
      %s215 = scalar_lea.vmem %s4, %s214
      %p216 = pneg %p153
      %p217 = pneg %p150
      %p218 = scmp.lt.s32.totalorder %s17, 1
      %s219 = scalar_select %p218, %s17, 1
      %s220 = smul.addr %s219, 2
      %s221 = scalar_lea.vmem %s5, %s220
      %p222 = scmp.lt.s32.totalorder %s17, 1
      %s223 = scalar_select %p222, %s17, 1
      %s224 = smul.addr %s223, 2
      %s225 = smul.addr %s224, 8
      %s226 = scalar_lea.vmem %s0, %s225
      %p227 = scmp.lt.s32.totalorder %s17, 1
      %s228 = scalar_select %p227, %s17, 1
      %s229 = smul.addr %s228, 2
      %s230 = smul.addr %s229, 8
      %s231 = scalar_lea.vmem %s4, %s230
      %p232 = scmp.lt.s32.totalorder %s17, 1
      %s233 = scalar_select %p232, %s17, 1
      %s234 = smul.addr %s233, 2
      %s235 = scalar_lea.vmem %s5, %s234
      %v236 = vld [vmem:[%s226] sm:$0xff]
      %v237 = vld [vmem:[%s226 + $0x8] sm:$0xff]
      %v238 = vld [vmem:[%s1] sm:$0x1]
      %v240 = vlaneseq
      %v241 = vshrl.u32 %v240, 7
      %v242 = vsub.s32 0, %v241
      %v243 = vrot.slane %v238, %v242
      %v245 = vmul.f32 %v236, %v243
      %v246 = vmul.f32 %v237, %v243
      %v247 = vld [vmem:[%s2] sm:$0x1]
      %v249 = vlaneseq
      %v250 = vshrl.u32 %v249, 7
      %v251 = vsub.s32 0, %v250
      %v252 = vrot.slane %v247, %v251
      %v254 = vadd.f32 %v245, %v252
      %v255 = vadd.f32 %v246, %v252
      %v256 = vmax.f32 %v254, 0.0
      %v257 = vmax.f32 %v255, 0.0
      %v258 = vlaneseq
      %vm259 = vcmp.ge.s32.totalorder %v258, 0
      %vm260 = vcmp.lt.s32.totalorder %v258, 144
      %vm261 = vmand %vm259, %vm260
      %262 = vst.msk [vmem:[#allocation2] ss:$8 sm:$0x3] %vm261, 0.0
      %263 = vst.msk [vmem:[#allocation2] ss:$8 sm:$0x0] %vm261, 0.0
      %s264 = scalar_lea.vmem [#allocation2], 33
      %265 = vst.msk [vmem:[%s264] ss:$8 sm:$0x3] %vm261, 0.0
      %266 = vst.msk [vmem:[%s264] ss:$8 sm:$0x0] %vm261, 0.0
      %vm267 = vcmask 64513
      %268 = vst.msk [vmem:[#allocation2] sm:$0xfe] %vm267, 0.0
      %vm269 = vcmask 64512
      %270 = vst.msk [vmem:[#allocation2 + $0x10] sm:$0xff] %vm269, 0.0
      %vm271 = vcmask 57344
      %272 = vst.msk [vmem:[#allocation2 + $0x20] sm:$0x1] %vm271, 0.0
      %vm273 = vcmask 130113
      %274 = vst.msk [vmem:[#allocation2 + $0x8] sm:$0xfe] %vm273, 0.0
      %vm275 = vcmask 130112
      %276 = vst.msk [vmem:[#allocation2 + $0x18] sm:$0xff] %vm275, 0.0
      %vm277 = vcmask 122944
      %278 = vst.msk [vmem:[#allocation2 + $0x28] sm:$0x1] %vm277, 0.0
      %vm281 = vcmask 1040384
      %v282 = vrot.slane %v256, 7
      %v283 = vrot.slane %v257, 7
      %v284 = vsel %vm281, %v282, %v283
      %285 = vrot.lane.b32.xlu0 %v282, 8
      %v286 = vpop.permute.xlu0 %285
      %287 = vrot.lane.b32.xlu0 %v284, 8
      %v288 = vpop.permute.xlu0 %287
      %289 = vrot.lane.b32.xlu0 %v283, 8
      %v290 = vpop.permute.xlu0 %289
      %vm294 = vcmask 1047617
      %295 = vst.msk [vmem:[#allocation2] sm:$0xfe] %vm294, %v286
      %296 = vst.msk [vmem:[#allocation2 + $0x8] sm:$0xfe] %vm267, %v286
      %vm297 = vcmask 1047616
      %298 = vst.msk [vmem:[#allocation2 + $0x10] sm:$0xff] %vm297, %v288
      %299 = vst.msk [vmem:[#allocation2 + $0x18] sm:$0xff] %vm269, %v288
      %vm300 = vcmask 1040448
      %301 = vst.msk [vmem:[#allocation2 + $0x20] sm:$0x1] %vm300, %v290
      %302 = vst.msk [vmem:[#allocation2 + $0x28] sm:$0x1] %vm271, %v290
      %v303 = vld [vmem:[#allocation2] sm:$0xff]
      %v304 = vld [vmem:[#allocation2 + $0x8] sm:$0xff]
      %v305 = vld [vmem:[#allocation2 + $0x10] sm:$0xff]
      %v306 = vld [vmem:[#allocation2 + $0x18] sm:$0xff]
      %v307 = vld [vmem:[%s3] sm:$0xff]
      %v308 = vld [vmem:[%s3 + $0x8] sm:$0xff]
      %v309 = vld [vmem:[%s3 + $0x10] sm:$0xff]
      %v310 = vld [vmem:[%s3 + $0x18] sm:$0xff]
      %v311 = vld [vmem:[%s3 + $0x20] sm:$0xff]
      %v312 = vld [vmem:[%s3 + $0x28] sm:$0xff]
      %v313 = vld [vmem:[%s3 + $0x30] sm:$0xff]
      %v314 = vld [vmem:[%s3 + $0x38] sm:$0xff]
      %v315 = vld [vmem:[%s3 + $0x40] sm:$0xff]
      %v316 = vld [vmem:[%s3 + $0x48] sm:$0xff]
      %v317 = vld [vmem:[%s3 + $0x50] sm:$0xff]
      %v318 = vld [vmem:[%s3 + $0x58] sm:$0xff]
      %v319 = vld [vmem:[%s3 + $0x60] sm:$0xff]
      %v320 = vld [vmem:[%s3 + $0x68] sm:$0xff]
      %v321 = vld [vmem:[%s3 + $0x70] sm:$0xff]
      %v322 = vld [vmem:[%s3 + $0x78] sm:$0xff]
      %v323 = vld [vmem:[%s3 + $0x80] sm:$0xff]
      %v324 = vld [vmem:[%s3 + $0x88] sm:$0xff]
      %v325 = vld [vmem:[#allocation2] sm:$0xfe]
      %v326 = vld [vmem:[#allocation2 + $0x8] sm:$0xfe]
      %v327 = vld [vmem:[#allocation2 + $0x20] sm:$0x1]
      %v328 = vld [vmem:[#allocation2 + $0x28] sm:$0x1]
      %s329 = scalar_lea.vmem %s3, 144
      %v330 = vld [vmem:[%s329] sm:$0xff]
      %v331 = vld [vmem:[%s329 + $0x8] sm:$0xff]
      %v332 = vld [vmem:[%s329 + $0x10] sm:$0xff]
      %v333 = vld [vmem:[%s329 + $0x18] sm:$0xff]
      %v334 = vld [vmem:[%s329 + $0x20] sm:$0xff]
      %v335 = vld [vmem:[%s329 + $0x28] sm:$0xff]
      %v336 = vld [vmem:[%s329 + $0x30] sm:$0xff]
      %v337 = vld [vmem:[%s329 + $0x38] sm:$0xff]
      %v338 = vld [vmem:[%s329 + $0x40] sm:$0xff]
      %v339 = vld [vmem:[%s329 + $0x48] sm:$0xff]
      %v340 = vld [vmem:[%s329 + $0x50] sm:$0xff]
      %v341 = vld [vmem:[%s329 + $0x58] sm:$0xff]
      %v342 = vld [vmem:[%s329 + $0x60] sm:$0xff]
      %v343 = vld [vmem:[%s329 + $0x68] sm:$0xff]
      %v344 = vld [vmem:[%s329 + $0x70] sm:$0xff]
      %v345 = vld [vmem:[%s329 + $0x78] sm:$0xff]
      %v346 = vld [vmem:[%s329 + $0x80] sm:$0xff]
      %v347 = vld [vmem:[%s329 + $0x88] sm:$0xff]
      %vm354 = vcmask 1046528
      %v355 = vrot.slane %v325, 1
      %v356 = vrot.slane %v305, 1
      %v357 = vsel %vm354, %v355, %v356
      %v358 = vrot.slane %v326, 1
      %v359 = vrot.slane %v306, 1
      %v360 = vsel %vm354, %v358, %v359
      %v361 = vrot.slane %v327, 1
      %v362 = vsel %vm354, %v356, %v361
      %v363 = vrot.slane %v328, 1
      %v364 = vsel %vm354, %v359, %v363
      %vm367 = vcmask 130048
      %v368 = vsel %vm367, %v360, 0
      %v370 = vsel %vm367, %v364, 0
      %372 = vmatprep.subr.mxu0 0.0
      %373 = vmatpush1.msra.mxu0 %v345
      %374 = vmatprep.subr.mxu0 0.0
      %375 = vmatpush1.msra.mxu0 %v344
      %376 = vmatprep.subr.mxu0 0.0
      %377 = vmatpush1.msra.mxu0 %v343
      %378 = vmatprep.subr.mxu0 0.0
      %379 = vmatpush1.msra.mxu0 %v342
      %380 = vmatprep.subr.mxu0 0.0
      %381 = vmatpush1.msra.mxu0 %v341
      %382 = vmatprep.subr.mxu0 0.0
      %383 = vmatpush1.msra.mxu0 %v340
      %384 = vmatprep.subr.mxu0 0.0
      %385 = vmatpush1.msra.mxu0 %v339
      %386 = vmatprep.subr.mxu0 0.0
      %387 = vmatpush1.msra.mxu0 %v338
      %388 = vmatprep.subr.mxu0 0.0
      %389 = vmatpush1.msra.mxu0 %v337
      %390 = vmatprep.subr.mxu0 0.0
      %391 = vmatpush1.msra.mxu0 %v336
      %392 = vmatprep.subr.mxu0 0.0
      %393 = vmatpush1.msra.mxu0 %v335
      %394 = vmatprep.subr.mxu0 0.0
      %395 = vmatpush1.msra.mxu0 %v334
      %396 = vmatprep.subr.mxu0 0.0
      %397 = vmatpush1.msra.mxu0 %v333
      %398 = vmatprep.subr.mxu0 0.0
      %399 = vmatpush1.msra.mxu0 %v332
      %400 = vmatprep.subr.mxu0 0.0
      %401 = vmatpush1.msra.mxu0 %v331
      %402 = vmatprep.subr.mxu0 0.0
      %403 = vmatpush1.msra.mxu0 %v330
      %404 = vmatprep.subr.mxu0 0.0
      %405 = vmatpush2.msra.mxu0 0.0
      %406 = vmatprep.subr.mxu0 0.0
      %407 = vmatpush2.msra.mxu0 0.0
      %408 = vmatprep.subr.mxu0 0.0
      %409 = vmatpush2.msra.mxu0 0.0
      %410 = vmatprep.subr.mxu0 0.0
      %411 = vmatpush2.msra.mxu0 0.0
      %412 = vmatprep.subr.mxu0 0.0
      %413 = vmatpush2.msra.mxu0 0.0
      %414 = vmatprep.subr.mxu0 0.0
      %415 = vmatpush2.msra.mxu0 0.0
      %416 = vmatprep.subr.mxu0 0.0
      %417 = vmatpush2.msra.mxu0 0.0
      %418 = vmatprep.subr.mxu0 0.0
      %419 = vmatpush2.msra.mxu0 0.0
      %420 = vmatprep.subr.mxu0 0.0
      %421 = vmatpush2.msra.mxu0 0.0
      %422 = vmatprep.subr.mxu0 0.0
      %423 = vmatpush2.msra.mxu0 0.0
      %424 = vmatprep.subr.mxu0 0.0
      %425 = vmatpush2.msra.mxu0 0.0
      %426 = vmatprep.subr.mxu0 0.0
      %427 = vmatpush2.msra.mxu0 0.0
      %428 = vmatprep.subr.mxu0 0.0
      %429 = vmatpush2.msra.mxu0 0.0
      %430 = vmatprep.subr.mxu0 0.0
      %431 = vmatpush2.msra.mxu0 0.0
      %432 = vmatprep.subr.mxu0 0.0
      %433 = vmatpush2.msra.mxu0 %v347
      %434 = vmatprep.subr.mxu0 0.0
      %435 = vmatpush2.msra.mxu0 %v346
      %436 = vmatprep.mubr.f32.mxu0 %v368
      %437 = vmatmul.mubr.f32.gmra.mxu0 %v357
      %v438 = vpop.f32.mrf.mxu0
      %v439 = vadd.f32 0.0, %v438
      %v440 = vpop.f32.mrf.mxu0
      %441 = vmatprep.mubr.f32.mxu0 %v370
      %442 = vmatmul.mubr.f32.gmra.mxu0 %v362
      %v443 = vpop.f32.mrf.mxu0
      %v444 = vadd.f32 0.0, %v443
      %v445 = vpop.f32.mrf.mxu0
      %446 = vdwg.mxu0
      %v448 = vsel %vm367, %v304, 0
      %v450 = vsel %vm367, %v306, 0
      %452 = vmatprep.subr.mxu0 0.0
      %453 = vmatpush1.msra.mxu0 %v322
      %454 = vmatprep.subr.mxu0 0.0
      %455 = vmatpush1.msra.mxu0 %v321
      %456 = vmatprep.subr.mxu0 0.0
      %457 = vmatpush1.msra.mxu0 %v320
      %458 = vmatprep.subr.mxu0 0.0
      %459 = vmatpush1.msra.mxu0 %v319
      %460 = vmatprep.subr.mxu0 0.0
      %461 = vmatpush1.msra.mxu0 %v318
      %462 = vmatprep.subr.mxu0 0.0
      %463 = vmatpush1.msra.mxu0 %v317
      %464 = vmatprep.subr.mxu0 0.0
      %465 = vmatpush1.msra.mxu0 %v316
      %466 = vmatprep.subr.mxu0 0.0
      %467 = vmatpush1.msra.mxu0 %v315
      %468 = vmatprep.subr.mxu0 0.0
      %469 = vmatpush1.msra.mxu0 %v314
      %470 = vmatprep.subr.mxu0 0.0
      %471 = vmatpush1.msra.mxu0 %v313
      %472 = vmatprep.subr.mxu0 0.0
      %473 = vmatpush1.msra.mxu0 %v312
      %474 = vmatprep.subr.mxu0 0.0
      %475 = vmatpush1.msra.mxu0 %v311
      %476 = vmatprep.subr.mxu0 0.0
      %477 = vmatpush1.msra.mxu0 %v310
      %478 = vmatprep.subr.mxu0 0.0
      %479 = vmatpush1.msra.mxu0 %v309
      %480 = vmatprep.subr.mxu0 0.0
      %481 = vmatpush1.msra.mxu0 %v308
      %482 = vmatprep.subr.mxu0 0.0
      %483 = vmatpush1.msra.mxu0 %v307
      %484 = vmatprep.subr.mxu0 0.0
      %485 = vmatpush2.msra.mxu0 0.0
      %486 = vmatprep.subr.mxu0 0.0
      %487 = vmatpush2.msra.mxu0 0.0
      %488 = vmatprep.subr.mxu0 0.0
      %489 = vmatpush2.msra.mxu0 0.0
      %490 = vmatprep.subr.mxu0 0.0
      %491 = vmatpush2.msra.mxu0 0.0
      %492 = vmatprep.subr.mxu0 0.0
      %493 = vmatpush2.msra.mxu0 0.0
      %494 = vmatprep.subr.mxu0 0.0
      %495 = vmatpush2.msra.mxu0 0.0
      %496 = vmatprep.subr.mxu0 0.0
      %497 = vmatpush2.msra.mxu0 0.0
      %498 = vmatprep.subr.mxu0 0.0
      %499 = vmatpush2.msra.mxu0 0.0
      %500 = vmatprep.subr.mxu0 0.0
      %501 = vmatpush2.msra.mxu0 0.0
      %502 = vmatprep.subr.mxu0 0.0
      %503 = vmatpush2.msra.mxu0 0.0
      %504 = vmatprep.subr.mxu0 0.0
      %505 = vmatpush2.msra.mxu0 0.0
      %506 = vmatprep.subr.mxu0 0.0
      %507 = vmatpush2.msra.mxu0 0.0
      %508 = vmatprep.subr.mxu0 0.0
      %509 = vmatpush2.msra.mxu0 0.0
      %510 = vmatprep.subr.mxu0 0.0
      %511 = vmatpush2.msra.mxu0 0.0
      %512 = vmatprep.subr.mxu0 0.0
      %513 = vmatpush2.msra.mxu0 %v324
      %514 = vmatprep.subr.mxu0 0.0
      %515 = vmatpush2.msra.mxu0 %v323
      %516 = vmatprep.mubr.f32.mxu0 %v448
      %517 = vmatmul.mubr.f32.gmra.mxu0 %v303
      %v518 = vpop.f32.mrf.mxu0
      %v519 = vadd.f32 %v439, %v518
      %v520 = vpop.f32.mrf.mxu0
      %521 = vmatprep.mubr.f32.mxu0 %v450
      %522 = vmatmul.mubr.f32.gmra.mxu0 %v305
      %v523 = vpop.f32.mrf.mxu0
      %v524 = vadd.f32 %v444, %v523
      %v525 = vpop.f32.mrf.mxu0
      %526 = vdwg.mxu0
      %v527 = vld [vmem:[#allocation2] sm:$0xfc]
      %v528 = vld [vmem:[#allocation2 + $0x8] sm:$0xfc]
      %v529 = vld [vmem:[#allocation2 + $0x20] sm:$0x3]
      %v530 = vld [vmem:[#allocation2 + $0x28] sm:$0x3]
      %s531 = scalar_lea.vmem %s3, 288
      %v532 = vld [vmem:[%s531] sm:$0xff]
      %v533 = vld [vmem:[%s531 + $0x8] sm:$0xff]
      %v534 = vld [vmem:[%s531 + $0x10] sm:$0xff]
      %v535 = vld [vmem:[%s531 + $0x18] sm:$0xff]
      %v536 = vld [vmem:[%s531 + $0x20] sm:$0xff]
      %v537 = vld [vmem:[%s531 + $0x28] sm:$0xff]
      %v538 = vld [vmem:[%s531 + $0x30] sm:$0xff]
      %v539 = vld [vmem:[%s531 + $0x38] sm:$0xff]
      %v540 = vld [vmem:[%s531 + $0x40] sm:$0xff]
      %v541 = vld [vmem:[%s531 + $0x48] sm:$0xff]
      %v542 = vld [vmem:[%s531 + $0x50] sm:$0xff]
      %v543 = vld [vmem:[%s531 + $0x58] sm:$0xff]
      %v544 = vld [vmem:[%s531 + $0x60] sm:$0xff]
      %v545 = vld [vmem:[%s531 + $0x68] sm:$0xff]
      %v546 = vld [vmem:[%s531 + $0x70] sm:$0xff]
      %v547 = vld [vmem:[%s531 + $0x78] sm:$0xff]
      %v548 = vld [vmem:[%s531 + $0x80] sm:$0xff]
      %v549 = vld [vmem:[%s531 + $0x88] sm:$0xff]
      %vm554 = vcmask 1045504
      %v555 = vrot.slane %v527, 2
      %v556 = vrot.slane %v305, 2
      %v557 = vsel %vm554, %v555, %v556
      %v558 = vrot.slane %v528, 2
      %v559 = vrot.slane %v306, 2
      %v560 = vsel %vm554, %v558, %v559
      %v561 = vrot.slane %v529, 2
      %v562 = vsel %vm554, %v556, %v561
      %v563 = vrot.slane %v530, 2
      %v564 = vsel %vm554, %v559, %v563
      %v567 = vsel %vm367, %v560, 0
      %v569 = vsel %vm367, %v564, 0
      %571 = vmatprep.subr.mxu0 0.0
      %572 = vmatpush1.msra.mxu0 %v547
      %573 = vmatprep.subr.mxu0 0.0
      %574 = vmatpush1.msra.mxu0 %v546
      %575 = vmatprep.subr.mxu0 0.0
      %576 = vmatpush1.msra.mxu0 %v545
      %577 = vmatprep.subr.mxu0 0.0
      %578 = vmatpush1.msra.mxu0 %v544
      %579 = vmatprep.subr.mxu0 0.0
      %580 = vmatpush1.msra.mxu0 %v543
      %581 = vmatprep.subr.mxu0 0.0
      %582 = vmatpush1.msra.mxu0 %v542
      %583 = vmatprep.subr.mxu0 0.0
      %584 = vmatpush1.msra.mxu0 %v541
      %585 = vmatprep.subr.mxu0 0.0
      %586 = vmatpush1.msra.mxu0 %v540
      %587 = vmatprep.subr.mxu0 0.0
      %588 = vmatpush1.msra.mxu0 %v539
      %589 = vmatprep.subr.mxu0 0.0
      %590 = vmatpush1.msra.mxu0 %v538
      %591 = vmatprep.subr.mxu0 0.0
      %592 = vmatpush1.msra.mxu0 %v537
      %593 = vmatprep.subr.mxu0 0.0
      %594 = vmatpush1.msra.mxu0 %v536
      %595 = vmatprep.subr.mxu0 0.0
      %596 = vmatpush1.msra.mxu0 %v535
      %597 = vmatprep.subr.mxu0 0.0
      %598 = vmatpush1.msra.mxu0 %v534
      %599 = vmatprep.subr.mxu0 0.0
      %600 = vmatpush1.msra.mxu0 %v533
      %601 = vmatprep.subr.mxu0 0.0
      %602 = vmatpush1.msra.mxu0 %v532
      %603 = vmatprep.subr.mxu0 0.0
      %604 = vmatpush2.msra.mxu0 0.0
      %605 = vmatprep.subr.mxu0 0.0
      %606 = vmatpush2.msra.mxu0 0.0
      %607 = vmatprep.subr.mxu0 0.0
      %608 = vmatpush2.msra.mxu0 0.0
      %609 = vmatprep.subr.mxu0 0.0
      %610 = vmatpush2.msra.mxu0 0.0
      %611 = vmatprep.subr.mxu0 0.0
      %612 = vmatpush2.msra.mxu0 0.0
      %613 = vmatprep.subr.mxu0 0.0
      %614 = vmatpush2.msra.mxu0 0.0
      %615 = vmatprep.subr.mxu0 0.0
      %616 = vmatpush2.msra.mxu0 0.0
      %617 = vmatprep.subr.mxu0 0.0
      %618 = vmatpush2.msra.mxu0 0.0
      %619 = vmatprep.subr.mxu0 0.0
      %620 = vmatpush2.msra.mxu0 0.0
      %621 = vmatprep.subr.mxu0 0.0
      %622 = vmatpush2.msra.mxu0 0.0
      %623 = vmatprep.subr.mxu0 0.0
      %624 = vmatpush2.msra.mxu0 0.0
      %625 = vmatprep.subr.mxu0 0.0
      %626 = vmatpush2.msra.mxu0 0.0
      %627 = vmatprep.subr.mxu0 0.0
      %628 = vmatpush2.msra.mxu0 0.0
      %629 = vmatprep.subr.mxu0 0.0
      %630 = vmatpush2.msra.mxu0 0.0
      %631 = vmatprep.subr.mxu0 0.0
      %632 = vmatpush2.msra.mxu0 %v549
      %633 = vmatprep.subr.mxu0 0.0
      %634 = vmatpush2.msra.mxu0 %v548
      %635 = vmatprep.mubr.f32.mxu0 %v567
      %636 = vmatmul.mubr.f32.gmra.mxu0 %v557
      %v637 = vpop.f32.mrf.mxu0
      %v638 = vadd.f32 0.0, %v637
      %v639 = vpop.f32.mrf.mxu0
      %640 = vmatprep.mubr.f32.mxu0 %v569
      %641 = vmatmul.mubr.f32.gmra.mxu0 %v562
      %v642 = vpop.f32.mrf.mxu0
      %v643 = vadd.f32 0.0, %v642
      %v644 = vpop.f32.mrf.mxu0
      %645 = vdwg.mxu0
      %v646 = vadd.f32 %v519, %v638
      %v647 = vadd.f32 %v524, %v643
      %648 = vst [vmem:[%s231] sm:$0xff] %v646
      %649 = vst [vmem:[%s231 + $0x8] sm:$0xff] %v647
      %v650 = vadd.f32 %v646, %v647
      %v651 = vrot.slane %v650, 4
      %v652 = vadd.f32 %v650, %v651
      %v653 = vrot.slane %v652, 2
      %v654 = vadd.f32 %v652, %v653
      %v655 = vrot.slane %v654, 1
      %v656 = vadd.f32 %v654, %v655
      %657 = vst [vmem:[%s235] sm:$0x1] %v656
      %v658 = vmul.f32 %v646, %v646
      %v659 = vmul.f32 %v647, %v647
      %v660 = vadd.f32 %v658, %v659
      %v661 = vrot.slane %v660, 4
      %v662 = vadd.f32 %v660, %v661
      %v663 = vrot.slane %v662, 2
      %v664 = vadd.f32 %v662, %v663
      %v665 = vrot.slane %v664, 1
      %v666 = vadd.f32 %v664, %v665
      %667 = vst [vmem:[%s235 + $0x1] sm:$0x1] %v666
      %p668 = scmp.lt.s32.totalorder %s17, 1
      %s669 = scalar_select %p668, %s17, 1
      %s670 = smul.addr %s669, 2
      %s671 = smul.addr %s670, 8
      %s672 = scalar_lea.vmem %s4, %s671
      %p673 = scmp.lt.s32.totalorder %s17, 1
      %s674 = scalar_select %p673, %s17, 1
      %s675 = smul.addr %s674, 2
      %s676 = scalar_lea.vmem %s5, %s675
      // Predicated region
      $region37: #{block_forward.4} parent=35 // pred_check
        %p677 = pneg %p124
      $region38: #{block_forward.4} parent=35 // pred_check_branch
        %679 = sbr.rel (%p677) target = $region40
      $region39: #{block_forward.4} parent=35 // pred_region
        _
      $region40: #{block_forward.4} parent=35 // pred_fallthru
        _
      // Predicated region
      $region41: #{block_forward.4} parent=35 // pred_check
        %p680 = pneg %p150
      $region42: #{block_forward.4} parent=35 // pred_check_branch
        %682 = sbr.rel (%p680) target = $region44
      $region43: #{block_forward.4} parent=35 // pred_region
        _
      $region44: #{block_forward.4} parent=35 // pred_fallthru
        _
    $region36: #{block_forward.4} parent=5 // pred_fallthru
      _
    %p683 = scmp.le.s32.totalorder 2, %s12
    // Predicated region
    $region45: #{block_forward.4} parent=5 // pred_check
      %p684 = pneg %p683
    $region46: #{block_forward.4} parent=5 // pred_check_branch
      %686 = sbr.rel (%p684) target = $region48
    $region47: #{block_forward.4} parent=5 // pred_region
      %s687 = ssub.s32 %s12, 2
      // Predicated region
      $region49: #{block_forward.4} parent=47 // pred_check
        %p688 = pneg %p130
      $region50: #{block_forward.4} parent=47 // pred_check_branch
        %690 = sbr.rel (%p688) target = $region52
      $region51: #{block_forward.4} parent=47 // pred_region
        %p691 = scmp.lt.s32.totalorder %s18, 1
        %s692 = scalar_select %p691, %s18, 1
        %s693 = smul.addr %s692, 2
        %s694 = smul.addr %s693, 8
        %s695 = scalar_lea.vmem %s4, %s694
      $region52: #{block_forward.4} parent=47 // pred_fallthru
        _
      // Predicated region
      $region53: #{block_forward.4} parent=47 // pred_check
        %p696 = pneg %p156
      $region54: #{block_forward.4} parent=47 // pred_check_branch
        %698 = sbr.rel (%p696) target = $region56
      $region55: #{block_forward.4} parent=47 // pred_region
        %p699 = scmp.lt.s32.totalorder %s18, 1
        %s700 = scalar_select %p699, %s18, 1
        %s701 = smul.addr %s700, 2
        %s702 = scalar_lea.vmem %s5, %s701
      $region56: #{block_forward.4} parent=47 // pred_fallthru
        _
    $region48: #{block_forward.4} parent=5 // pred_fallthru
      _
  $region6: #{block_forward.4} parent=0 // loop_footer
    %s16 = sadd.s32 1, %s12
  $region7: #{block_forward.4} parent=0 // loop_footer_branch
    %11 = sbr.rel target = $region3
  $region8: #{block_forward.4} parent=0 // loop_exit
    _

// kernel: block_forward.5
$region0: #{block_forward.5}
  #allocation0 [shape = 'u32[]', space=smem, size = 0x4, offset = 0x4, fixed_abs, tag = 'smem constant byte address 0x4 - core index']
  #allocation1 [shape = 'u32[144,128]{1,0:T(1,128)}', space=vmem, size = 0x12000, scoped, tag = 'internal scratch']
  %s0 = inlined_call_operand.vmem [shape: f32[2,16,128], index: 0, kind: input, shape index: {}]
  %s1 = inlined_call_operand.vmem [shape: f32[2,16,128], index: 1, kind: input, shape index: {}]
  %s2 = inlined_call_operand.vmem [shape: f32[1,128], index: 2, kind: input, shape index: {}]
  %s3 = inlined_call_operand.vmem [shape: f32[1,128], index: 3, kind: input, shape index: {}]
  %s4 = inlined_call_operand.vmem [shape: f32[2,16,128], index: 4, kind: output, shape index: {}]
  %s5 = sld [smem:[#allocation0]]
  $region49: #{block_forward.5} parent=0
    _
  %s7 = ssub.s32 1, %s5
  %s8 = scalar_select 0, %s7, %s5
  loop: start=0, step=1, limit=4
  $region2: #{block_forward.5} parent=0 // loop_pre_header
    _
  $region3: #{block_forward.5} parent=0 // loop_header
    %s10 = sphi 0, %s14
    %p11 = scmp.ge.s32.totalorder %s10, 4
    %s20 = sphi 0, %s22
    %s23 = sphi 0, %s20
    %s24 = sphi 0, %s23
    %s40 = sphi 0, %s24
    %s46 = sphi 0, %s48
    %s49 = sphi 0, %s46
    %s50 = sphi 0, %s49
    %s66 = sphi 0, %s50
    %s70 = sphi 0, %s70
    %s72 = sphi 0, %s70
    %s73 = sphi 0, %s72
    %s87 = sphi 0, %s73
    %s91 = sphi 0, %s91
    %s93 = sphi 0, %s91
    %s94 = sphi 0, %s93
    %s108 = sphi 0, %s94
    %s114 = sphi 0, %s116
    %s117 = sphi 0, %s114
    %s118 = sphi 0, %s117
    %s134 = sphi 0, %s118
  $region4: #{block_forward.5} parent=0 // loop_header_branch
    %13 = sbr.rel (%p11) target = $region8
  $region5: #{block_forward.5} parent=0 // loop_body
    %s15 = ssub.s32 %s10, 1
    %s16 = ssub.s32 %s10, 2
    %s17 = sadd.s32 %s10, 1
    %s18 = ssub.s32 %s10, %s17
    %p19 = scmp.eq.s32.totalorder %s18, 0
    %s21 = sadd.s32 %s20, 1
    %s22 = scalar_select %p19, %s20, %s21
    %p25 = pneg %p19
    %p26 = scmp.eq.s32.totalorder %s10, 1
    %p27 = por %p25, %p26
    %p28 = scmp.ne.s32.totalorder %s20, %s23
    %p29 = scmp.eq.s32.totalorder %s10, 0
    %p30 = por %p28, %p29
    %p31 = scmp.ne.s32.totalorder %s20, %s23
    %p32 = scmp.eq.s32.totalorder %s15, 1
    %p33 = por %p31, %p32
    %p34 = scmp.ne.s32.totalorder %s23, %s24
    %p35 = scmp.eq.s32.totalorder %s15, 0
    %p36 = por %p34, %p35
    %p37 = scmp.ne.s32.totalorder %s23, %s24
    %p38 = scmp.eq.s32.totalorder %s16, 1
    %p39 = por %p37, %p38
    %p41 = scmp.ne.s32.totalorder %s24, %s40
    %p42 = scmp.eq.s32.totalorder %s16, 0
    %p43 = por %p41, %p42
    %s44 = ssub.s32 %s10, %s17
    %p45 = scmp.eq.s32.totalorder %s44, 0
    %s47 = sadd.s32 %s46, 1
    %s48 = scalar_select %p45, %s46, %s47
    %p51 = pneg %p45
    %p52 = scmp.eq.s32.totalorder %s10, 1
    %p53 = por %p51, %p52
    %p54 = scmp.ne.s32.totalorder %s46, %s49
    %p55 = scmp.eq.s32.totalorder %s10, 0
    %p56 = por %p54, %p55
    %p57 = scmp.ne.s32.totalorder %s46, %s49
    %p58 = scmp.eq.s32.totalorder %s15, 1
    %p59 = por %p57, %p58
    %p60 = scmp.ne.s32.totalorder %s49, %s50
    %p61 = scmp.eq.s32.totalorder %s15, 0
    %p62 = por %p60, %p61
    %p63 = scmp.ne.s32.totalorder %s49, %s50
    %p64 = scmp.eq.s32.totalorder %s16, 1
    %p65 = por %p63, %p64
    %p67 = scmp.ne.s32.totalorder %s50, %s66
    %p68 = scmp.eq.s32.totalorder %s16, 0
    %p69 = por %p67, %p68
    %s71 = sadd.s32 %s70, 1
    %p74 = scmp.eq.s32.totalorder %s10, 1
    %p75 = scmp.ne.s32.totalorder %s70, %s72
    %p76 = scmp.eq.s32.totalorder %s10, 0
    %p77 = por %p75, %p76
    %p78 = scmp.ne.s32.totalorder %s70, %s72
    %p79 = scmp.eq.s32.totalorder %s15, 1
    %p80 = por %p78, %p79
    %p81 = scmp.ne.s32.totalorder %s72, %s73
    %p82 = scmp.eq.s32.totalorder %s15, 0
    %p83 = por %p81, %p82
    %p84 = scmp.ne.s32.totalorder %s72, %s73
    %p85 = scmp.eq.s32.totalorder %s16, 1
    %p86 = por %p84, %p85
    %p88 = scmp.ne.s32.totalorder %s73, %s87
    %p89 = scmp.eq.s32.totalorder %s16, 0
    %p90 = por %p88, %p89
    %s92 = sadd.s32 %s91, 1
    %p95 = scmp.eq.s32.totalorder %s10, 1
    %p96 = scmp.ne.s32.totalorder %s91, %s93
    %p97 = scmp.eq.s32.totalorder %s10, 0
    %p98 = por %p96, %p97
    %p99 = scmp.ne.s32.totalorder %s91, %s93
    %p100 = scmp.eq.s32.totalorder %s15, 1
    %p101 = por %p99, %p100
    %p102 = scmp.ne.s32.totalorder %s93, %s94
    %p103 = scmp.eq.s32.totalorder %s15, 0
    %p104 = por %p102, %p103
    %p105 = scmp.ne.s32.totalorder %s93, %s94
    %p106 = scmp.eq.s32.totalorder %s16, 1
    %p107 = por %p105, %p106
    %p109 = scmp.ne.s32.totalorder %s94, %s108
    %p110 = scmp.eq.s32.totalorder %s16, 0
    %p111 = por %p109, %p110
    %s112 = ssub.s32 %s10, %s17
    %p113 = scmp.eq.s32.totalorder %s112, 0
    %s115 = sadd.s32 %s114, 1
    %s116 = scalar_select %p113, %s114, %s115
    %p119 = pneg %p113
    %p120 = scmp.eq.s32.totalorder %s10, 1
    %p121 = por %p119, %p120
    %p122 = scmp.ne.s32.totalorder %s114, %s117
    %p123 = scmp.eq.s32.totalorder %s10, 0
    %p124 = por %p122, %p123
    %p125 = scmp.ne.s32.totalorder %s114, %s117
    %p126 = scmp.eq.s32.totalorder %s15, 1
    %p127 = por %p125, %p126
    %p128 = scmp.ne.s32.totalorder %s117, %s118
    %p129 = scmp.eq.s32.totalorder %s15, 0
    %p130 = por %p128, %p129
    %p131 = scmp.ne.s32.totalorder %s117, %s118
    %p132 = scmp.eq.s32.totalorder %s16, 1
    %p133 = por %p131, %p132
    %p135 = scmp.ne.s32.totalorder %s118, %s134
    %p136 = scmp.eq.s32.totalorder %s16, 0
    %p137 = por %p135, %p136
    %p138 = scmp.le.s32.totalorder 1, %s10
    %p139 = scmp.lt.s32.totalorder %s10, 3
    %p140 = pnand %p138, %p139
    %p141 = pneg %p140
    // Predicated region
    $region9: #{block_forward.5} parent=5 // pred_check
      _
    $region10: #{block_forward.5} parent=5 // pred_check_branch
      %143 = sbr.rel (%p140) target = $region12
    $region11: #{block_forward.5} parent=5 // pred_region
      %s144 = ssub.s32 %s10, 1
      // Predicated region
      $region13: #{block_forward.5} parent=11 // pred_check
        %p145 = pneg %p83
      $region14: #{block_forward.5} parent=11 // pred_check_branch
        %147 = sbr.rel (%p145) target = $region16
      $region15: #{block_forward.5} parent=11 // pred_region
        _
      $region16: #{block_forward.5} parent=11 // pred_fallthru
        _
      // Predicated region
      $region17: #{block_forward.5} parent=11 // pred_check
        %p148 = pneg %p104
      $region18: #{block_forward.5} parent=11 // pred_check_branch
        %150 = sbr.rel (%p148) target = $region20
      $region19: #{block_forward.5} parent=11 // pred_region
        _
      $region20: #{block_forward.5} parent=11 // pred_fallthru
        _
    $region12: #{block_forward.5} parent=5 // pred_fallthru
      _
    %p151 = scmp.lt.s32.totalorder %s10, 2
    // Predicated region
    $region21: #{block_forward.5} parent=5 // pred_check
      %p152 = pneg %p151
    $region22: #{block_forward.5} parent=5 // pred_check_branch
      %154 = sbr.rel (%p152) target = $region24
    $region23: #{block_forward.5} parent=5 // pred_region
      // Predicated region
      $region25: #{block_forward.5} parent=23 // pred_check
        %p155 = pneg %p30
      $region26: #{block_forward.5} parent=23 // pred_check_branch
        %157 = sbr.rel (%p155) target = $region28
      $region27: #{block_forward.5} parent=23 // pred_region
        %p158 = scmp.lt.s32.totalorder %s10, 1
        %s159 = scalar_select %p158, %s10, 1
        %s160 = smul.addr %s159, 2
        %s161 = smul.addr %s160, 8
        %s162 = scalar_lea.vmem %s0, %s161
      $region28: #{block_forward.5} parent=23 // pred_fallthru
        _
      // Predicated region
      $region29: #{block_forward.5} parent=23 // pred_check
        %p163 = pneg %p56
      $region30: #{block_forward.5} parent=23 // pred_check_branch
        %165 = sbr.rel (%p163) target = $region32
      $region31: #{block_forward.5} parent=23 // pred_region
        %p166 = scmp.lt.s32.totalorder %s10, 1
        %s167 = scalar_select %p166, %s10, 1
        %s168 = smul.addr %s167, 2
        %s169 = smul.addr %s168, 8
        %s170 = scalar_lea.vmem %s1, %s169
      $region32: #{block_forward.5} parent=23 // pred_fallthru
        _
    $region24: #{block_forward.5} parent=5 // pred_fallthru
      _
    %p171 = scmp.le.s32.totalorder 1, %s10
    %p172 = scmp.lt.s32.totalorder %s10, 3
    %p173 = pnand %p171, %p172
    %p174 = pneg %p173
    // Predicated region
    $region33: #{block_forward.5} parent=5 // pred_check
      _
    $region34: #{block_forward.5} parent=5 // pred_check_branch
      %176 = sbr.rel (%p173) target = $region36
    $region35: #{block_forward.5} parent=5 // pred_region
      %s177 = ssub.s32 %s10, 1
      %p178 = scmp.lt.s32.totalorder %s15, 1
      %s179 = scalar_select %p178, %s15, 1
      %s180 = smul.addr %s179, 2
      %s181 = smul.addr %s180, 8
      %s182 = scalar_lea.vmem %s0, %s181
      %p183 = pneg %p36
      %p184 = pneg %p33
      %p185 = scmp.lt.s32.totalorder %s15, 1
      %s186 = scalar_select %p185, %s15, 1
      %s187 = smul.addr %s186, 2
      %s188 = smul.addr %s187, 8
      %s189 = scalar_lea.vmem %s1, %s188
      %p190 = pneg %p62
      %p191 = pneg %p59
      %p192 = pneg %p83
      %p193 = pneg %p80
      %p194 = pneg %p104
      %p195 = pneg %p101
      %p196 = pneg %p130
      %p197 = pneg %p127
      %p198 = scmp.lt.s32.totalorder %s15, 1
      %s199 = scalar_select %p198, %s15, 1
      %s200 = smul.addr %s199, 2
      %s201 = smul.addr %s200, 8
      %s202 = scalar_lea.vmem %s4, %s201
      %p203 = scmp.lt.s32.totalorder %s15, 1
      %s204 = scalar_select %p203, %s15, 1
      %s205 = smul.addr %s204, 2
      %s206 = smul.addr %s205, 8
      %s207 = scalar_lea.vmem %s0, %s206
      %p208 = scmp.lt.s32.totalorder %s15, 1
      %s209 = scalar_select %p208, %s15, 1
      %s210 = smul.addr %s209, 2
      %s211 = smul.addr %s210, 8
      %s212 = scalar_lea.vmem %s1, %s211
      %p213 = scmp.lt.s32.totalorder %s15, 1
      %s214 = scalar_select %p213, %s15, 1
      %s215 = smul.addr %s214, 2
      %s216 = smul.addr %s215, 8
      %s217 = scalar_lea.vmem %s4, %s216
      %v218 = vld [vmem:[%s212] sm:$0xff]
      %v219 = vld [vmem:[%s212 + $0x8] sm:$0xff]
      %v220 = vld [vmem:[%s2] sm:$0x1]
      %v222 = vlaneseq
      %v223 = vshrl.u32 %v222, 7
      %v224 = vsub.s32 0, %v223
      %v225 = vrot.slane %v220, %v224
      %v227 = vmul.f32 %v218, %v225
      %v228 = vmul.f32 %v219, %v225
      %v229 = vld [vmem:[%s3] sm:$0x1]
      %v231 = vlaneseq
      %v232 = vshrl.u32 %v231, 7
      %v233 = vsub.s32 0, %v232
      %v234 = vrot.slane %v229, %v233
      %v236 = vadd.f32 %v227, %v234
      %v237 = vadd.f32 %v228, %v234
      %v238 = vld [vmem:[%s207] sm:$0xff]
      %v239 = vld [vmem:[%s207 + $0x8] sm:$0xff]
      %v240 = vadd.f32 %v238, %v236
      %v241 = vadd.f32 %v239, %v237
      %v242 = vmax.f32 %v240, 0.0
      %v243 = vmax.f32 %v241, 0.0
      %244 = vst [vmem:[%s217] sm:$0xff] %v242
      %245 = vst [vmem:[%s217 + $0x8] sm:$0xff] %v243
      %p246 = scmp.lt.s32.totalorder %s15, 1
      %s247 = scalar_select %p246, %s15, 1
      %s248 = smul.addr %s247, 2
      %s249 = smul.addr %s248, 8
      %s250 = scalar_lea.vmem %s4, %s249
      // Predicated region
      $region37: #{block_forward.5} parent=35 // pred_check
        %p251 = pneg %p127
      $region38: #{block_forward.5} parent=35 // pred_check_branch
        %253 = sbr.rel (%p251) target = $region40
      $region39: #{block_forward.5} parent=35 // pred_region
        _
      $region40: #{block_forward.5} parent=35 // pred_fallthru
        _
    $region36: #{block_forward.5} parent=5 // pred_fallthru
      _
    %p254 = scmp.le.s32.totalorder 2, %s10
    // Predicated region
    $region41: #{block_forward.5} parent=5 // pred_check
      %p255 = pneg %p254
    $region42: #{block_forward.5} parent=5 // pred_check_branch
      %257 = sbr.rel (%p255) target = $region44
    $region43: #{block_forward.5} parent=5 // pred_region
      %s258 = ssub.s32 %s10, 2
      // Predicated region
      $region45: #{block_forward.5} parent=43 // pred_check
        %p259 = pneg %p133
      $region46: #{block_forward.5} parent=43 // pred_check_branch
        %261 = sbr.rel (%p259) target = $region48
      $region47: #{block_forward.5} parent=43 // pred_region
        %p262 = scmp.lt.s32.totalorder %s16, 1
        %s263 = scalar_select %p262, %s16, 1
        %s264 = smul.addr %s263, 2
        %s265 = smul.addr %s264, 8
        %s266 = scalar_lea.vmem %s4, %s265
      $region48: #{block_forward.5} parent=43 // pred_fallthru
        _
    $region44: #{block_forward.5} parent=5 // pred_fallthru
      _
  $region6: #{block_forward.5} parent=0 // loop_footer
    %s14 = sadd.s32 1, %s10
  $region7: #{block_forward.5} parent=0 // loop_footer_branch
    %9 = sbr.rel target = $region3
  $region8: #{block_forward.5} parent=0 // loop_exit
    _

</llo_original>
